<compile_context>
chip_gen: v7x
topology: tpu7x:2x2x1
jax: 0.10.0
libtpu: 0.0.40
codegen_flags: <defaults>
</compile_context>

<pallas_src>
import functools

import jax
import jax.numpy as jnp
from jax.experimental import pallas as pl
from jax.experimental.pallas import tpu as pltpu

HALO = 128  # flat lane halo per image; multiple of 128 and >= W + 1


# ---------------------------------------------------------------------------
# Fused kernel
# ---------------------------------------------------------------------------
def _resnet_block_kernel(x_ref, masks_ref, w1_ref, w2_ref, b1_ref, b2_ref,
                         o_ref, xw_ref, y1p_ref, *, N, H, W, C, Cout, KP):
    Mi = H * W
    P = HALO
    Mp = Mi + 2 * P

    maskL = masks_ref[0:1, :]   # (1, Mi): 1.0 where output column j >= 1
    maskR = masks_ref[1:2, :]   # (1, Mi): 1.0 where output column j <= W-2

    # One-time zeroing (single grid step): K-padding rows of the stacked-window
    # scratch (so the zero weight columns never multiply uninitialized bits)
    # and the halo lanes of the y1 buffer.  All interiors are overwritten.
    if KP != max(C, Cout):
        xw_ref[...] = jnp.zeros(xw_ref.shape, jnp.float32)
    for n in range(N):
        y1p_ref[n, :, 0:P] = jnp.zeros((Cout, P), jnp.float32)
        y1p_ref[n, :, P + Mi:Mp] = jnp.zeros((Cout, P), jnp.float32)

    def stage(read, rows):
        """Implicit im2col: stage the 9 lane-shifted (column-masked) 3x3 tap
        windows of a zero-haloed image stack into xw_ref as (9*KP, N*Mi)."""
        for kh in range(3):
            for kw in range(3):
                t = kh * 3 + kw
                s = (kh - 1) * W + (kw - 1)
                for n in range(N):
                    src = read(n, P + s, P + s + Mi)          # (rows, Mi)
                    if kw == 0:     # tap reads column j-1: invalid at j == 0
                        src = src * maskL
                    elif kw == 2:   # tap reads column j+1: invalid at j == W-1
                        src = src * maskR
                    xw_ref[t * KP:t * KP + rows, n * Mi:(n + 1) * Mi] = src

    # ---- conv1 + bn1 (scale folded into w1) + relu: one K = 9*KP MXU dot ----
    stage(lambda n, lo, hi: x_ref[n, :, lo:hi], C)
    y1 = jnp.maximum(
        jnp.dot(w1_ref[...], xw_ref[...], preferred_element_type=jnp.float32)
        + b1_ref[...], 0.0)                                   # (Cout, N*Mi)

    # Stage y1 into its zero-haloed VMEM buffer (aligned interior stores only).
    for n in range(N):
        y1p_ref[n, :, P:P + Mi] = y1[:, n * Mi:(n + 1) * Mi]

    # ---- conv2 + bn2 + identity shortcut + relu (window scratch reused) ----
    stage(lambda n, lo, hi: y1p_ref[n, :, lo:hi], Cout)
    y2 = (jnp.dot(w2_ref[...], xw_ref[...], preferred_element_type=jnp.float32)
          + b2_ref[...])                                      # (Cout, N*Mi)
    for n in range(N):
        res = x_ref[n, :, P:P + Mi]                           # identity shortcut
        o_ref[n] = jnp.maximum(y2[:, n * Mi:(n + 1) * Mi] + res,
                               0.0).astype(o_ref.dtype)


# ---------------------------------------------------------------------------
# Wrapper: BN folding, weight packing, layout plumbing
# ---------------------------------------------------------------------------
def fold_bn(gamma, beta, mean, var, eps=1e-5):
    scale = gamma / jnp.sqrt(var + eps)
    bias = beta - mean * scale
    return scale, bias


def _pack_conv_weights(w_oihw, scale, kp):
    """Fold BN scale into the 3x3 weights and lay them out as (Cout, 9*kp):
    tap t = kh*3+kw occupies columns [t*kp, t*kp + Cin); the rest are zero."""
    cout, cin = w_oihw.shape[0], w_oihw.shape[1]
    wf = (w_oihw * scale[:, None, None, None]).astype(jnp.float32)
    wt = jnp.transpose(wf, (2, 3, 0, 1)).reshape(9, cout, cin)
    wt = jnp.pad(wt, ((0, 0), (0, 0), (0, kp - cin)))
    return jnp.transpose(wt, (1, 0, 2)).reshape(cout, 9 * kp)


def resnet_block_forward(x_nchw, params, eps=1e-5):
    """ResNetBlock forward, eval-mode BN, stride=1, Cin == Cout (identity)."""
    N, C, H, W = x_nchw.shape
    Cout = params["w1"].shape[0]
    if Cout != C:
        raise NotImplementedError("projection shortcut (Cin != Cout) not implemented")

    Mi = H * W
    P = HALO
    assert P >= W + 1 and P % 128 == 0
    Mp = Mi + 2 * P
    KP = ((max(C, Cout) + 7) // 8) * 8        # 8-aligned per-tap K slot

    s1, b1 = fold_bn(params["gamma1"], params["beta1"], params["mean1"], params["var1"], eps)
    s2, b2 = fold_bn(params["gamma2"], params["beta2"], params["mean2"], params["var2"], eps)
    w1k = _pack_conv_weights(params["w1"], s1, KP)
    w2k = _pack_conv_weights(params["w2"], s2, KP)
    b1c = b1.reshape(Cout, 1).astype(jnp.float32)
    b2c = b2.reshape(Cout, 1).astype(jnp.float32)

    # NCHW -> (N, C, H*W) with a 128-lane zero halo per image so every 3x3 tap
    # is a static lane-shifted window and all interior accesses stay aligned.
    x_flat = x_nchw.reshape(N, C, Mi).astype(jnp.float32)
    x_pad = jnp.pad(x_flat, ((0, 0), (0, 0), (P, P)))

    # Column-validity masks, precomputed here (no per-lane modulo in-kernel).
    col = jnp.arange(Mi, dtype=jnp.int32) % W
    masks = jnp.stack([(col >= 1).astype(jnp.float32),
                       (col <= W - 2).astype(jnp.float32)], axis=0)   # (2, Mi)

    kernel = functools.partial(_resnet_block_kernel, N=N, H=H, W=W, C=C,
                               Cout=Cout, KP=KP)
    cost = pl.CostEstimate(
        flops=2 * (2 * N * Mi * 9 * C * Cout),                # two 3x3 convs
        transcendentals=0,
        bytes_accessed=4 * (N * C * Mp + N * Cout * Mi
                            + 2 * Cout * 9 * KP + 2 * Cout + 2 * Mi),
    )

    out = pl.pallas_call(
        kernel,
        out_shape=jax.ShapeDtypeStruct((N, Cout, Mi), jnp.float32),
        grid_spec=pltpu.PrefetchScalarGridSpec(
            num_scalar_prefetch=0,
            grid=(1,),                          # whole (tiny) batch in one step
            in_specs=[
                pl.BlockSpec((N, C, Mp), lambda i: (0, 0, 0)),     # haloed x
                pl.BlockSpec((2, Mi), lambda i: (0, 0)),           # column masks
                pl.BlockSpec((Cout, 9 * KP), lambda i: (0, 0)),    # folded conv1 w
                pl.BlockSpec((Cout, 9 * KP), lambda i: (0, 0)),    # folded conv2 w
                pl.BlockSpec((Cout, 1), lambda i: (0, 0)),         # bn1 bias
                pl.BlockSpec((Cout, 1), lambda i: (0, 0)),         # bn2 bias
            ],
            out_specs=pl.BlockSpec((N, Cout, Mi), lambda i: (0, 0, 0)),
            scratch_shapes=[
                pltpu.VMEM((9 * KP, N * Mi), jnp.float32),   # stacked im2col taps
                pltpu.VMEM((N, Cout, Mp), jnp.float32),      # zero-haloed y1
            ],
        ),
        compiler_params=pltpu.CompilerParams(
            dimension_semantics=("arbitrary",),
            vmem_limit_bytes=64 * 1024 * 1024,
        ),
        cost_estimate=cost,
    )(x_pad, masks, w1k, w2k, b1c, b2c)

    return out.reshape(N, Cout, H, W)                         # already NCHW


# ---------------------------------------------------------------------------
# Pure-JAX reference (for correctness check)
# ---------------------------------------------------------------------------
def _conv3x3_ref(x_nchw, w_oihw):
    return jax.lax.conv_general_dilated(
        x_nchw, w_oihw, window_strides=(1, 1), padding=((1, 1), (1, 1)),
        dimension_numbers=("NCHW", "OIHW", "NCHW"))


def resnet_block_ref(x_nchw, params, eps=1e-5):
    s1, b1 = fold_bn(params["gamma1"], params["beta1"], params["mean1"], params["var1"], eps)
    s2, b2 = fold_bn(params["gamma2"], params["beta2"], params["mean2"], params["var2"], eps)
    y1 = jnp.maximum(_conv3x3_ref(x_nchw, params["w1"]) * s1[None, :, None, None]
                     + b1[None, :, None, None], 0.0)
    y2 = (_conv3x3_ref(y1, params["w2"]) * s2[None, :, None, None]
          + b2[None, :, None, None] + x_nchw)
    return jnp.maximum(y2, 0.0)


# ---------------------------------------------------------------------------
if __name__ == "__main__":
    N, C, H, W = 2, 4, 16, 16      # in_channels == out_channels == 4, stride = 1
    key = jax.random.PRNGKey(0)
    kx, k1, k2 = jax.random.split(key, 3)

    params = {
        "w1": 0.1 * jax.random.normal(k1, (C, C, 3, 3), jnp.float32),
        "w2": 0.1 * jax.random.normal(k2, (C, C, 3, 3), jnp.float32),
        "gamma1": 1.0 + 0.10 * jnp.arange(C, dtype=jnp.float32),
        "beta1": 0.05 * jnp.arange(C, dtype=jnp.float32),
        "mean1": 0.01 * jnp.arange(C, dtype=jnp.float32),
        "var1": 1.0 + 0.02 * jnp.arange(C, dtype=jnp.float32),
        "gamma2": 1.0 - 0.05 * jnp.arange(C, dtype=jnp.float32),
        "beta2": -0.03 * jnp.arange(C, dtype=jnp.float32),
        "mean2": 0.02 * jnp.arange(C, dtype=jnp.float32),
        "var2": 1.0 + 0.01 * jnp.arange(C, dtype=jnp.float32),
    }

    x = jax.random.normal(kx, (N, C, H, W), jnp.float32)   # NCHW, like PyTorch

    out = jax.jit(resnet_block_forward)(x, params)
    out = jax.block_until_ready(out)

    ref = resnet_block_ref(x, params)
    assert out.shape == (N, C, H, W)
    assert jnp.allclose(out, ref, atol=1e-4, rtol=1e-4), "mismatch vs JAX reference"

    print("KERNEL_OK")
</pallas_src>

<mosaic_0001>
module attributes {stable_mosaic.version = 11 : i64} {
  func.func @_resnet_block_kernel(%arg0: i32, %arg1: memref<2x4x512xf32, #tpu.memory_space<vmem>>, %arg2: memref<2x256xf32, #tpu.memory_space<vmem>>, %arg3: memref<4x72xf32, #tpu.memory_space<vmem>>, %arg4: memref<4x72xf32, #tpu.memory_space<vmem>>, %arg5: memref<4x1xf32, #tpu.memory_space<vmem>>, %arg6: memref<4x1xf32, #tpu.memory_space<vmem>>, %arg7: memref<2x4x256xf32, #tpu.memory_space<vmem>>, %arg8: memref<72x512xf32, #tpu.memory_space<vmem>>, %arg9: memref<2x4x512xf32, #tpu.memory_space<vmem>>) attributes {dimension_semantics = [#tpu.dimension_semantics<arbitrary>], iteration_bounds = array<i64: 1>, scalar_prefetch = 0 : i64, scratch_operands = 2 : i64, tpu.core_type = #tpu.core_type<tc>, window_params = [{pipeline_mode = #tpu.pipeline_mode<synchronous>, transform_indices = @transform_0, window_bounds = array<i64: 2, 4, 512>}, {pipeline_mode = #tpu.pipeline_mode<synchronous>, transform_indices = @transform_1, window_bounds = array<i64: 2, 256>}, {pipeline_mode = #tpu.pipeline_mode<synchronous>, transform_indices = @transform_2, window_bounds = array<i64: 4, 72>}, {pipeline_mode = #tpu.pipeline_mode<synchronous>, transform_indices = @transform_3, window_bounds = array<i64: 4, 72>}, {pipeline_mode = #tpu.pipeline_mode<synchronous>, transform_indices = @transform_4, window_bounds = array<i64: 4, 1>}, {pipeline_mode = #tpu.pipeline_mode<synchronous>, transform_indices = @transform_5, window_bounds = array<i64: 4, 1>}, {pipeline_mode = #tpu.pipeline_mode<synchronous>, transform_indices = @transform_6, window_bounds = array<i64: 2, 4, 256>}]} {
    %c0 = arith.constant 0 : index
    %c0_0 = arith.constant 0 : index
    %0 = vector.load %arg2[%c0, %c0_0] : memref<2x256xf32, #tpu.memory_space<vmem>>, vector<1x256xf32>
    %c1 = arith.constant 1 : index
    %c0_1 = arith.constant 0 : index
    %1 = vector.load %arg2[%c1, %c0_1] : memref<2x256xf32, #tpu.memory_space<vmem>>, vector<1x256xf32>
    %cst = arith.constant 0.000000e+00 : f32
    %2 = vector.broadcast %cst : f32 to vector<72x512xf32>
    %c0_2 = arith.constant 0 : index
    %c0_3 = arith.constant 0 : index
    %3 = vector.load %arg8[%c0_2, %c0_3] : memref<72x512xf32, #tpu.memory_space<vmem>>, vector<72x512xf32>
    tpu.vector_store %arg8[%c0_2, %c0_3], %2 {strides = array<i32>} : memref<72x512xf32, #tpu.memory_space<vmem>>, vector<72x512xf32>,
    %cst_4 = arith.constant 0.000000e+00 : f32
    %4 = vector.broadcast %cst_4 : f32 to vector<4x128xf32>
    %c0_5 = arith.constant 0 : index
    %c0_6 = arith.constant 0 : index
    %c0_7 = arith.constant 0 : index
    %5 = vector.load %arg9[%c0_5, %c0_6, %c0_7] : memref<2x4x512xf32, #tpu.memory_space<vmem>>, vector<1x4x128xf32>
    %6 = vector.shape_cast %5 : vector<1x4x128xf32> to vector<4x128xf32>
    %7 = vector.shape_cast %4 : vector<4x128xf32> to vector<1x4x128xf32>
    tpu.vector_store %arg9[%c0_5, %c0_6, %c0_7], %7 {strides = array<i32>} : memref<2x4x512xf32, #tpu.memory_space<vmem>>, vector<1x4x128xf32>,
    %cst_8 = arith.constant 0.000000e+00 : f32
    %8 = vector.broadcast %cst_8 : f32 to vector<4x128xf32>
    %c0_9 = arith.constant 0 : index
    %c0_10 = arith.constant 0 : index
    %c384 = arith.constant 384 : index
    %9 = vector.load %arg9[%c0_9, %c0_10, %c384] : memref<2x4x512xf32, #tpu.memory_space<vmem>>, vector<1x4x128xf32>
    %10 = vector.shape_cast %9 : vector<1x4x128xf32> to vector<4x128xf32>
    %11 = vector.shape_cast %8 : vector<4x128xf32> to vector<1x4x128xf32>
    tpu.vector_store %arg9[%c0_9, %c0_10, %c384], %11 {strides = array<i32>} : memref<2x4x512xf32, #tpu.memory_space<vmem>>, vector<1x4x128xf32>,
    %cst_11 = arith.constant 0.000000e+00 : f32
    %12 = vector.broadcast %cst_11 : f32 to vector<4x128xf32>
    %c1_12 = arith.constant 1 : index
    %c0_13 = arith.constant 0 : index
    %c0_14 = arith.constant 0 : index
    %13 = vector.load %arg9[%c1_12, %c0_13, %c0_14] : memref<2x4x512xf32, #tpu.memory_space<vmem>>, vector<1x4x128xf32>
    %14 = vector.shape_cast %13 : vector<1x4x128xf32> to vector<4x128xf32>
    %15 = vector.shape_cast %12 : vector<4x128xf32> to vector<1x4x128xf32>
    tpu.vector_store %arg9[%c1_12, %c0_13, %c0_14], %15 {strides = array<i32>} : memref<2x4x512xf32, #tpu.memory_space<vmem>>, vector<1x4x128xf32>,
    %cst_15 = arith.constant 0.000000e+00 : f32
    %16 = vector.broadcast %cst_15 : f32 to vector<4x128xf32>
    %c1_16 = arith.constant 1 : index
    %c0_17 = arith.constant 0 : index
    %c384_18 = arith.constant 384 : index
    %17 = vector.load %arg9[%c1_16, %c0_17, %c384_18] : memref<2x4x512xf32, #tpu.memory_space<vmem>>, vector<1x4x128xf32>
    %18 = vector.shape_cast %17 : vector<1x4x128xf32> to vector<4x128xf32>
    %19 = vector.shape_cast %16 : vector<4x128xf32> to vector<1x4x128xf32>
    tpu.vector_store %arg9[%c1_16, %c0_17, %c384_18], %19 {strides = array<i32>} : memref<2x4x512xf32, #tpu.memory_space<vmem>>, vector<1x4x128xf32>,
    %c0_19 = arith.constant 0 : index
    %c0_20 = arith.constant 0 : index
    %c111 = arith.constant 111 : index
    %20 = vector.load %arg1[%c0_19, %c0_20, %c111] : memref<2x4x512xf32, #tpu.memory_space<vmem>>, vector<1x4x256xf32>
    %21 = vector.shape_cast %20 : vector<1x4x256xf32> to vector<4x256xf32>
    %22 = vector.broadcast %0 : vector<1x256xf32> to vector<4x256xf32>
    %23 = arith.mulf %21, %22 : vector<4x256xf32>
    %c0_21 = arith.constant 0 : index
    %c0_22 = arith.constant 0 : index
    %24 = vector.load %arg8[%c0_21, %c0_22] : memref<72x512xf32, #tpu.memory_space<vmem>>, vector<4x256xf32>
    tpu.vector_store %arg8[%c0_21, %c0_22], %23 {strides = array<i32>} : memref<72x512xf32, #tpu.memory_space<vmem>>, vector<4x256xf32>,
    %c1_23 = arith.constant 1 : index
    %c0_24 = arith.constant 0 : index
    %c111_25 = arith.constant 111 : index
    %25 = vector.load %arg1[%c1_23, %c0_24, %c111_25] : memref<2x4x512xf32, #tpu.memory_space<vmem>>, vector<1x4x256xf32>
    %26 = vector.shape_cast %25 : vector<1x4x256xf32> to vector<4x256xf32>
    %27 = vector.broadcast %0 : vector<1x256xf32> to vector<4x256xf32>
    %28 = arith.mulf %26, %27 : vector<4x256xf32>
    %c0_26 = arith.constant 0 : index
    %c256 = arith.constant 256 : index
    %29 = vector.load %arg8[%c0_26, %c256] : memref<72x512xf32, #tpu.memory_space<vmem>>, vector<4x256xf32>
    tpu.vector_store %arg8[%c0_26, %c256], %28 {strides = array<i32>} : memref<72x512xf32, #tpu.memory_space<vmem>>, vector<4x256xf32>,
    %c0_27 = arith.constant 0 : index
    %c0_28 = arith.constant 0 : index
    %c112 = arith.constant 112 : index
    %30 = vector.load %arg1[%c0_27, %c0_28, %c112] : memref<2x4x512xf32, #tpu.memory_space<vmem>>, vector<1x4x256xf32>
    %31 = vector.shape_cast %30 : vector<1x4x256xf32> to vector<4x256xf32>
    %c8 = arith.constant 8 : index
    %c0_29 = arith.constant 0 : index
    %32 = vector.load %arg8[%c8, %c0_29] : memref<72x512xf32, #tpu.memory_space<vmem>>, vector<4x256xf32>
    tpu.vector_store %arg8[%c8, %c0_29], %31 {strides = array<i32>} : memref<72x512xf32, #tpu.memory_space<vmem>>, vector<4x256xf32>,
    %c1_30 = arith.constant 1 : index
    %c0_31 = arith.constant 0 : index
    %c112_32 = arith.constant 112 : index
    %33 = vector.load %arg1[%c1_30, %c0_31, %c112_32] : memref<2x4x512xf32, #tpu.memory_space<vmem>>, vector<1x4x256xf32>
    %34 = vector.shape_cast %33 : vector<1x4x256xf32> to vector<4x256xf32>
    %c8_33 = arith.constant 8 : index
    %c256_34 = arith.constant 256 : index
    %35 = vector.load %arg8[%c8_33, %c256_34] : memref<72x512xf32, #tpu.memory_space<vmem>>, vector<4x256xf32>
    tpu.vector_store %arg8[%c8_33, %c256_34], %34 {strides = array<i32>} : memref<72x512xf32, #tpu.memory_space<vmem>>, vector<4x256xf32>,
    %c0_35 = arith.constant 0 : index
    %c0_36 = arith.constant 0 : index
    %c113 = arith.constant 113 : index
    %36 = vector.load %arg1[%c0_35, %c0_36, %c113] : memref<2x4x512xf32, #tpu.memory_space<vmem>>, vector<1x4x256xf32>
    %37 = vector.shape_cast %36 : vector<1x4x256xf32> to vector<4x256xf32>
    %38 = vector.broadcast %1 : vector<1x256xf32> to vector<4x256xf32>
    %39 = arith.mulf %37, %38 : vector<4x256xf32>
    %c16 = arith.constant 16 : index
    %c0_37 = arith.constant 0 : index
    %40 = vector.load %arg8[%c16, %c0_37] : memref<72x512xf32, #tpu.memory_space<vmem>>, vector<4x256xf32>
    tpu.vector_store %arg8[%c16, %c0_37], %39 {strides = array<i32>} : memref<72x512xf32, #tpu.memory_space<vmem>>, vector<4x256xf32>,
    %c1_38 = arith.constant 1 : index
    %c0_39 = arith.constant 0 : index
    %c113_40 = arith.constant 113 : index
    %41 = vector.load %arg1[%c1_38, %c0_39, %c113_40] : memref<2x4x512xf32, #tpu.memory_space<vmem>>, vector<1x4x256xf32>
    %42 = vector.shape_cast %41 : vector<1x4x256xf32> to vector<4x256xf32>
    %43 = vector.broadcast %1 : vector<1x256xf32> to vector<4x256xf32>
    %44 = arith.mulf %42, %43 : vector<4x256xf32>
    %c16_41 = arith.constant 16 : index
    %c256_42 = arith.constant 256 : index
    %45 = vector.load %arg8[%c16_41, %c256_42] : memref<72x512xf32, #tpu.memory_space<vmem>>, vector<4x256xf32>
    tpu.vector_store %arg8[%c16_41, %c256_42], %44 {strides = array<i32>} : memref<72x512xf32, #tpu.memory_space<vmem>>, vector<4x256xf32>,
    %c0_43 = arith.constant 0 : index
    %c0_44 = arith.constant 0 : index
    %c127 = arith.constant 127 : index
    %46 = vector.load %arg1[%c0_43, %c0_44, %c127] : memref<2x4x512xf32, #tpu.memory_space<vmem>>, vector<1x4x256xf32>
    %47 = vector.shape_cast %46 : vector<1x4x256xf32> to vector<4x256xf32>
    %48 = vector.broadcast %0 : vector<1x256xf32> to vector<4x256xf32>
    %49 = arith.mulf %47, %48 : vector<4x256xf32>
    %c24 = arith.constant 24 : index
    %c0_45 = arith.constant 0 : index
    %50 = vector.load %arg8[%c24, %c0_45] : memref<72x512xf32, #tpu.memory_space<vmem>>, vector<4x256xf32>
    tpu.vector_store %arg8[%c24, %c0_45], %49 {strides = array<i32>} : memref<72x512xf32, #tpu.memory_space<vmem>>, vector<4x256xf32>,
    %c1_46 = arith.constant 1 : index
    %c0_47 = arith.constant 0 : index
    %c127_48 = arith.constant 127 : index
    %51 = vector.load %arg1[%c1_46, %c0_47, %c127_48] : memref<2x4x512xf32, #tpu.memory_space<vmem>>, vector<1x4x256xf32>
    %52 = vector.shape_cast %51 : vector<1x4x256xf32> to vector<4x256xf32>
    %53 = vector.broadcast %0 : vector<1x256xf32> to vector<4x256xf32>
    %54 = arith.mulf %52, %53 : vector<4x256xf32>
    %c24_49 = arith.constant 24 : index
    %c256_50 = arith.constant 256 : index
    %55 = vector.load %arg8[%c24_49, %c256_50] : memref<72x512xf32, #tpu.memory_space<vmem>>, vector<4x256xf32>
    tpu.vector_store %arg8[%c24_49, %c256_50], %54 {strides = array<i32>} : memref<72x512xf32, #tpu.memory_space<vmem>>, vector<4x256xf32>,
    %c0_51 = arith.constant 0 : index
    %c0_52 = arith.constant 0 : index
    %c128 = arith.constant 128 : index
    %56 = vector.load %arg1[%c0_51, %c0_52, %c128] : memref<2x4x512xf32, #tpu.memory_space<vmem>>, vector<1x4x256xf32>
    %57 = vector.shape_cast %56 : vector<1x4x256xf32> to vector<4x256xf32>
    %c32 = arith.constant 32 : index
    %c0_53 = arith.constant 0 : index
    %58 = vector.load %arg8[%c32, %c0_53] : memref<72x512xf32, #tpu.memory_space<vmem>>, vector<4x256xf32>
    tpu.vector_store %arg8[%c32, %c0_53], %57 {strides = array<i32>} : memref<72x512xf32, #tpu.memory_space<vmem>>, vector<4x256xf32>,
    %c1_54 = arith.constant 1 : index
    %c0_55 = arith.constant 0 : index
    %c128_56 = arith.constant 128 : index
    %59 = vector.load %arg1[%c1_54, %c0_55, %c128_56] : memref<2x4x512xf32, #tpu.memory_space<vmem>>, vector<1x4x256xf32>
    %60 = vector.shape_cast %59 : vector<1x4x256xf32> to vector<4x256xf32>
    %c32_57 = arith.constant 32 : index
    %c256_58 = arith.constant 256 : index
    %61 = vector.load %arg8[%c32_57, %c256_58] : memref<72x512xf32, #tpu.memory_space<vmem>>, vector<4x256xf32>
    tpu.vector_store %arg8[%c32_57, %c256_58], %60 {strides = array<i32>} : memref<72x512xf32, #tpu.memory_space<vmem>>, vector<4x256xf32>,
    %c0_59 = arith.constant 0 : index
    %c0_60 = arith.constant 0 : index
    %c129 = arith.constant 129 : index
    %62 = vector.load %arg1[%c0_59, %c0_60, %c129] : memref<2x4x512xf32, #tpu.memory_space<vmem>>, vector<1x4x256xf32>
    %63 = vector.shape_cast %62 : vector<1x4x256xf32> to vector<4x256xf32>
    %64 = vector.broadcast %1 : vector<1x256xf32> to vector<4x256xf32>
    %65 = arith.mulf %63, %64 : vector<4x256xf32>
    %c40 = arith.constant 40 : index
    %c0_61 = arith.constant 0 : index
    %66 = vector.load %arg8[%c40, %c0_61] : memref<72x512xf32, #tpu.memory_space<vmem>>, vector<4x256xf32>
    tpu.vector_store %arg8[%c40, %c0_61], %65 {strides = array<i32>} : memref<72x512xf32, #tpu.memory_space<vmem>>, vector<4x256xf32>,
    %c1_62 = arith.constant 1 : index
    %c0_63 = arith.constant 0 : index
    %c129_64 = arith.constant 129 : index
    %67 = vector.load %arg1[%c1_62, %c0_63, %c129_64] : memref<2x4x512xf32, #tpu.memory_space<vmem>>, vector<1x4x256xf32>
    %68 = vector.shape_cast %67 : vector<1x4x256xf32> to vector<4x256xf32>
    %69 = vector.broadcast %1 : vector<1x256xf32> to vector<4x256xf32>
    %70 = arith.mulf %68, %69 : vector<4x256xf32>
    %c40_65 = arith.constant 40 : index
    %c256_66 = arith.constant 256 : index
    %71 = vector.load %arg8[%c40_65, %c256_66] : memref<72x512xf32, #tpu.memory_space<vmem>>, vector<4x256xf32>
    tpu.vector_store %arg8[%c40_65, %c256_66], %70 {strides = array<i32>} : memref<72x512xf32, #tpu.memory_space<vmem>>, vector<4x256xf32>,
    %c0_67 = arith.constant 0 : index
    %c0_68 = arith.constant 0 : index
    %c143 = arith.constant 143 : index
    %72 = vector.load %arg1[%c0_67, %c0_68, %c143] : memref<2x4x512xf32, #tpu.memory_space<vmem>>, vector<1x4x256xf32>
    %73 = vector.shape_cast %72 : vector<1x4x256xf32> to vector<4x256xf32>
    %74 = vector.broadcast %0 : vector<1x256xf32> to vector<4x256xf32>
    %75 = arith.mulf %73, %74 : vector<4x256xf32>
    %c48 = arith.constant 48 : index
    %c0_69 = arith.constant 0 : index
    %76 = vector.load %arg8[%c48, %c0_69] : memref<72x512xf32, #tpu.memory_space<vmem>>, vector<4x256xf32>
    tpu.vector_store %arg8[%c48, %c0_69], %75 {strides = array<i32>} : memref<72x512xf32, #tpu.memory_space<vmem>>, vector<4x256xf32>,
    %c1_70 = arith.constant 1 : index
    %c0_71 = arith.constant 0 : index
    %c143_72 = arith.constant 143 : index
    %77 = vector.load %arg1[%c1_70, %c0_71, %c143_72] : memref<2x4x512xf32, #tpu.memory_space<vmem>>, vector<1x4x256xf32>
    %78 = vector.shape_cast %77 : vector<1x4x256xf32> to vector<4x256xf32>
    %79 = vector.broadcast %0 : vector<1x256xf32> to vector<4x256xf32>
    %80 = arith.mulf %78, %79 : vector<4x256xf32>
    %c48_73 = arith.constant 48 : index
    %c256_74 = arith.constant 256 : index
    %81 = vector.load %arg8[%c48_73, %c256_74] : memref<72x512xf32, #tpu.memory_space<vmem>>, vector<4x256xf32>
    tpu.vector_store %arg8[%c48_73, %c256_74], %80 {strides = array<i32>} : memref<72x512xf32, #tpu.memory_space<vmem>>, vector<4x256xf32>,
    %c0_75 = arith.constant 0 : index
    %c0_76 = arith.constant 0 : index
    %c144 = arith.constant 144 : index
    %82 = vector.load %arg1[%c0_75, %c0_76, %c144] : memref<2x4x512xf32, #tpu.memory_space<vmem>>, vector<1x4x256xf32>
    %83 = vector.shape_cast %82 : vector<1x4x256xf32> to vector<4x256xf32>
    %c56 = arith.constant 56 : index
    %c0_77 = arith.constant 0 : index
    %84 = vector.load %arg8[%c56, %c0_77] : memref<72x512xf32, #tpu.memory_space<vmem>>, vector<4x256xf32>
    tpu.vector_store %arg8[%c56, %c0_77], %83 {strides = array<i32>} : memref<72x512xf32, #tpu.memory_space<vmem>>, vector<4x256xf32>,
    %c1_78 = arith.constant 1 : index
    %c0_79 = arith.constant 0 : index
    %c144_80 = arith.constant 144 : index
    %85 = vector.load %arg1[%c1_78, %c0_79, %c144_80] : memref<2x4x512xf32, #tpu.memory_space<vmem>>, vector<1x4x256xf32>
    %86 = vector.shape_cast %85 : vector<1x4x256xf32> to vector<4x256xf32>
    %c56_81 = arith.constant 56 : index
    %c256_82 = arith.constant 256 : index
    %87 = vector.load %arg8[%c56_81, %c256_82] : memref<72x512xf32, #tpu.memory_space<vmem>>, vector<4x256xf32>
    tpu.vector_store %arg8[%c56_81, %c256_82], %86 {strides = array<i32>} : memref<72x512xf32, #tpu.memory_space<vmem>>, vector<4x256xf32>,
    %c0_83 = arith.constant 0 : index
    %c0_84 = arith.constant 0 : index
    %c145 = arith.constant 145 : index
    %88 = vector.load %arg1[%c0_83, %c0_84, %c145] : memref<2x4x512xf32, #tpu.memory_space<vmem>>, vector<1x4x256xf32>
    %89 = vector.shape_cast %88 : vector<1x4x256xf32> to vector<4x256xf32>
    %90 = vector.broadcast %1 : vector<1x256xf32> to vector<4x256xf32>
    %91 = arith.mulf %89, %90 : vector<4x256xf32>
    %c64 = arith.constant 64 : index
    %c0_85 = arith.constant 0 : index
    %92 = vector.load %arg8[%c64, %c0_85] : memref<72x512xf32, #tpu.memory_space<vmem>>, vector<4x256xf32>
    tpu.vector_store %arg8[%c64, %c0_85], %91 {strides = array<i32>} : memref<72x512xf32, #tpu.memory_space<vmem>>, vector<4x256xf32>,
    %c1_86 = arith.constant 1 : index
    %c0_87 = arith.constant 0 : index
    %c145_88 = arith.constant 145 : index
    %93 = vector.load %arg1[%c1_86, %c0_87, %c145_88] : memref<2x4x512xf32, #tpu.memory_space<vmem>>, vector<1x4x256xf32>
    %94 = vector.shape_cast %93 : vector<1x4x256xf32> to vector<4x256xf32>
    %95 = vector.broadcast %1 : vector<1x256xf32> to vector<4x256xf32>
    %96 = arith.mulf %94, %95 : vector<4x256xf32>
    %c64_89 = arith.constant 64 : index
    %c256_90 = arith.constant 256 : index
    %97 = vector.load %arg8[%c64_89, %c256_90] : memref<72x512xf32, #tpu.memory_space<vmem>>, vector<4x256xf32>
    tpu.vector_store %arg8[%c64_89, %c256_90], %96 {strides = array<i32>} : memref<72x512xf32, #tpu.memory_space<vmem>>, vector<4x256xf32>,
    %c0_91 = arith.constant 0 : index
    %c0_92 = arith.constant 0 : index
    %98 = vector.load %arg3[%c0_91, %c0_92] : memref<4x72xf32, #tpu.memory_space<vmem>>, vector<4x72xf32>
    %c0_93 = arith.constant 0 : index
    %c0_94 = arith.constant 0 : index
    %99 = vector.load %arg8[%c0_93, %c0_94] : memref<72x512xf32, #tpu.memory_space<vmem>>, vector<72x512xf32>
    %cst_95 = arith.constant dense<0.000000e+00> : vector<4x512xf32>
    %100 = tpu.matmul %98, %99, %cst_95 {dimension_numbers = #tpu.dot_dimension_numbers<[1], [0], [0], [1], [0, 0, 1, 1], [], []>} : vector<4x72xf32>, vector<72x512xf32>, vector<4x512xf32> -> vector<4x512xf32>
    %c0_96 = arith.constant 0 : index
    %c0_97 = arith.constant 0 : index
    %101 = vector.load %arg5[%c0_96, %c0_97] : memref<4x1xf32, #tpu.memory_space<vmem>>, vector<4x1xf32>
    %102 = vector.broadcast %101 : vector<4x1xf32> to vector<4x512xf32>
    %103 = arith.addf %100, %102 : vector<4x512xf32>
    %cst_98 = arith.constant 0.000000e+00 : f32
    %104 = vector.broadcast %cst_98 : f32 to vector<4x512xf32>
    %105 = arith.maximumf %103, %104 : vector<4x512xf32>
    %106 = vector.extract_strided_slice %105 {offsets = [0, 0], sizes = [4, 256], strides = [1, 1]} : vector<4x512xf32> to vector<4x256xf32>
    %c0_99 = arith.constant 0 : index
    %c0_100 = arith.constant 0 : index
    %c128_101 = arith.constant 128 : index
    %107 = vector.load %arg9[%c0_99, %c0_100, %c128_101] : memref<2x4x512xf32, #tpu.memory_space<vmem>>, vector<1x4x256xf32>
    %108 = vector.shape_cast %107 : vector<1x4x256xf32> to vector<4x256xf32>
    %109 = vector.shape_cast %106 : vector<4x256xf32> to vector<1x4x256xf32>
    tpu.vector_store %arg9[%c0_99, %c0_100, %c128_101], %109 {strides = array<i32>} : memref<2x4x512xf32, #tpu.memory_space<vmem>>, vector<1x4x256xf32>,
    %110 = vector.extract_strided_slice %105 {offsets = [0, 256], sizes = [4, 256], strides = [1, 1]} : vector<4x512xf32> to vector<4x256xf32>
    %c1_102 = arith.constant 1 : index
    %c0_103 = arith.constant 0 : index
    %c128_104 = arith.constant 128 : index
    %111 = vector.load %arg9[%c1_102, %c0_103, %c128_104] : memref<2x4x512xf32, #tpu.memory_space<vmem>>, vector<1x4x256xf32>
    %112 = vector.shape_cast %111 : vector<1x4x256xf32> to vector<4x256xf32>
    %113 = vector.shape_cast %110 : vector<4x256xf32> to vector<1x4x256xf32>
    tpu.vector_store %arg9[%c1_102, %c0_103, %c128_104], %113 {strides = array<i32>} : memref<2x4x512xf32, #tpu.memory_space<vmem>>, vector<1x4x256xf32>,
    %c0_105 = arith.constant 0 : index
    %c0_106 = arith.constant 0 : index
    %c111_107 = arith.constant 111 : index
    %114 = vector.load %arg9[%c0_105, %c0_106, %c111_107] : memref<2x4x512xf32, #tpu.memory_space<vmem>>, vector<1x4x256xf32>
    %115 = vector.shape_cast %114 : vector<1x4x256xf32> to vector<4x256xf32>
    %116 = vector.broadcast %0 : vector<1x256xf32> to vector<4x256xf32>
    %117 = arith.mulf %115, %116 : vector<4x256xf32>
    %c0_108 = arith.constant 0 : index
    %c0_109 = arith.constant 0 : index
    %118 = vector.load %arg8[%c0_108, %c0_109] : memref<72x512xf32, #tpu.memory_space<vmem>>, vector<4x256xf32>
    tpu.vector_store %arg8[%c0_108, %c0_109], %117 {strides = array<i32>} : memref<72x512xf32, #tpu.memory_space<vmem>>, vector<4x256xf32>,
    %c1_110 = arith.constant 1 : index
    %c0_111 = arith.constant 0 : index
    %c111_112 = arith.constant 111 : index
    %119 = vector.load %arg9[%c1_110, %c0_111, %c111_112] : memref<2x4x512xf32, #tpu.memory_space<vmem>>, vector<1x4x256xf32>
    %120 = vector.shape_cast %119 : vector<1x4x256xf32> to vector<4x256xf32>
    %121 = vector.broadcast %0 : vector<1x256xf32> to vector<4x256xf32>
    %122 = arith.mulf %120, %121 : vector<4x256xf32>
    %c0_113 = arith.constant 0 : index
    %c256_114 = arith.constant 256 : index
    %123 = vector.load %arg8[%c0_113, %c256_114] : memref<72x512xf32, #tpu.memory_space<vmem>>, vector<4x256xf32>
    tpu.vector_store %arg8[%c0_113, %c256_114], %122 {strides = array<i32>} : memref<72x512xf32, #tpu.memory_space<vmem>>, vector<4x256xf32>,
    %c0_115 = arith.constant 0 : index
    %c0_116 = arith.constant 0 : index
    %c112_117 = arith.constant 112 : index
    %124 = vector.load %arg9[%c0_115, %c0_116, %c112_117] : memref<2x4x512xf32, #tpu.memory_space<vmem>>, vector<1x4x256xf32>
    %125 = vector.shape_cast %124 : vector<1x4x256xf32> to vector<4x256xf32>
    %c8_118 = arith.constant 8 : index
    %c0_119 = arith.constant 0 : index
    %126 = vector.load %arg8[%c8_118, %c0_119] : memref<72x512xf32, #tpu.memory_space<vmem>>, vector<4x256xf32>
    tpu.vector_store %arg8[%c8_118, %c0_119], %125 {strides = array<i32>} : memref<72x512xf32, #tpu.memory_space<vmem>>, vector<4x256xf32>,
    %c1_120 = arith.constant 1 : index
    %c0_121 = arith.constant 0 : index
    %c112_122 = arith.constant 112 : index
    %127 = vector.load %arg9[%c1_120, %c0_121, %c112_122] : memref<2x4x512xf32, #tpu.memory_space<vmem>>, vector<1x4x256xf32>
    %128 = vector.shape_cast %127 : vector<1x4x256xf32> to vector<4x256xf32>
    %c8_123 = arith.constant 8 : index
    %c256_124 = arith.constant 256 : index
    %129 = vector.load %arg8[%c8_123, %c256_124] : memref<72x512xf32, #tpu.memory_space<vmem>>, vector<4x256xf32>
    tpu.vector_store %arg8[%c8_123, %c256_124], %128 {strides = array<i32>} : memref<72x512xf32, #tpu.memory_space<vmem>>, vector<4x256xf32>,
    %c0_125 = arith.constant 0 : index
    %c0_126 = arith.constant 0 : index
    %c113_127 = arith.constant 113 : index
    %130 = vector.load %arg9[%c0_125, %c0_126, %c113_127] : memref<2x4x512xf32, #tpu.memory_space<vmem>>, vector<1x4x256xf32>
    %131 = vector.shape_cast %130 : vector<1x4x256xf32> to vector<4x256xf32>
    %132 = vector.broadcast %1 : vector<1x256xf32> to vector<4x256xf32>
    %133 = arith.mulf %131, %132 : vector<4x256xf32>
    %c16_128 = arith.constant 16 : index
    %c0_129 = arith.constant 0 : index
    %134 = vector.load %arg8[%c16_128, %c0_129] : memref<72x512xf32, #tpu.memory_space<vmem>>, vector<4x256xf32>
    tpu.vector_store %arg8[%c16_128, %c0_129], %133 {strides = array<i32>} : memref<72x512xf32, #tpu.memory_space<vmem>>, vector<4x256xf32>,
    %c1_130 = arith.constant 1 : index
    %c0_131 = arith.constant 0 : index
    %c113_132 = arith.constant 113 : index
    %135 = vector.load %arg9[%c1_130, %c0_131, %c113_132] : memref<2x4x512xf32, #tpu.memory_space<vmem>>, vector<1x4x256xf32>
    %136 = vector.shape_cast %135 : vector<1x4x256xf32> to vector<4x256xf32>
    %137 = vector.broadcast %1 : vector<1x256xf32> to vector<4x256xf32>
    %138 = arith.mulf %136, %137 : vector<4x256xf32>
    %c16_133 = arith.constant 16 : index
    %c256_134 = arith.constant 256 : index
    %139 = vector.load %arg8[%c16_133, %c256_134] : memref<72x512xf32, #tpu.memory_space<vmem>>, vector<4x256xf32>
    tpu.vector_store %arg8[%c16_133, %c256_134], %138 {strides = array<i32>} : memref<72x512xf32, #tpu.memory_space<vmem>>, vector<4x256xf32>,
    %c0_135 = arith.constant 0 : index
    %c0_136 = arith.constant 0 : index
    %c127_137 = arith.constant 127 : index
    %140 = vector.load %arg9[%c0_135, %c0_136, %c127_137] : memref<2x4x512xf32, #tpu.memory_space<vmem>>, vector<1x4x256xf32>
    %141 = vector.shape_cast %140 : vector<1x4x256xf32> to vector<4x256xf32>
    %142 = vector.broadcast %0 : vector<1x256xf32> to vector<4x256xf32>
    %143 = arith.mulf %141, %142 : vector<4x256xf32>
    %c24_138 = arith.constant 24 : index
    %c0_139 = arith.constant 0 : index
    %144 = vector.load %arg8[%c24_138, %c0_139] : memref<72x512xf32, #tpu.memory_space<vmem>>, vector<4x256xf32>
    tpu.vector_store %arg8[%c24_138, %c0_139], %143 {strides = array<i32>} : memref<72x512xf32, #tpu.memory_space<vmem>>, vector<4x256xf32>,
    %c1_140 = arith.constant 1 : index
    %c0_141 = arith.constant 0 : index
    %c127_142 = arith.constant 127 : index
    %145 = vector.load %arg9[%c1_140, %c0_141, %c127_142] : memref<2x4x512xf32, #tpu.memory_space<vmem>>, vector<1x4x256xf32>
    %146 = vector.shape_cast %145 : vector<1x4x256xf32> to vector<4x256xf32>
    %147 = vector.broadcast %0 : vector<1x256xf32> to vector<4x256xf32>
    %148 = arith.mulf %146, %147 : vector<4x256xf32>
    %c24_143 = arith.constant 24 : index
    %c256_144 = arith.constant 256 : index
    %149 = vector.load %arg8[%c24_143, %c256_144] : memref<72x512xf32, #tpu.memory_space<vmem>>, vector<4x256xf32>
    tpu.vector_store %arg8[%c24_143, %c256_144], %148 {strides = array<i32>} : memref<72x512xf32, #tpu.memory_space<vmem>>, vector<4x256xf32>,
    %c0_145 = arith.constant 0 : index
    %c0_146 = arith.constant 0 : index
    %c128_147 = arith.constant 128 : index
    %150 = vector.load %arg9[%c0_145, %c0_146, %c128_147] : memref<2x4x512xf32, #tpu.memory_space<vmem>>, vector<1x4x256xf32>
    %151 = vector.shape_cast %150 : vector<1x4x256xf32> to vector<4x256xf32>
    %c32_148 = arith.constant 32 : index
    %c0_149 = arith.constant 0 : index
    %152 = vector.load %arg8[%c32_148, %c0_149] : memref<72x512xf32, #tpu.memory_space<vmem>>, vector<4x256xf32>
    tpu.vector_store %arg8[%c32_148, %c0_149], %151 {strides = array<i32>} : memref<72x512xf32, #tpu.memory_space<vmem>>, vector<4x256xf32>,
    %c1_150 = arith.constant 1 : index
    %c0_151 = arith.constant 0 : index
    %c128_152 = arith.constant 128 : index
    %153 = vector.load %arg9[%c1_150, %c0_151, %c128_152] : memref<2x4x512xf32, #tpu.memory_space<vmem>>, vector<1x4x256xf32>
    %154 = vector.shape_cast %153 : vector<1x4x256xf32> to vector<4x256xf32>
    %c32_153 = arith.constant 32 : index
    %c256_154 = arith.constant 256 : index
    %155 = vector.load %arg8[%c32_153, %c256_154] : memref<72x512xf32, #tpu.memory_space<vmem>>, vector<4x256xf32>
    tpu.vector_store %arg8[%c32_153, %c256_154], %154 {strides = array<i32>} : memref<72x512xf32, #tpu.memory_space<vmem>>, vector<4x256xf32>,
    %c0_155 = arith.constant 0 : index
    %c0_156 = arith.constant 0 : index
    %c129_157 = arith.constant 129 : index
    %156 = vector.load %arg9[%c0_155, %c0_156, %c129_157] : memref<2x4x512xf32, #tpu.memory_space<vmem>>, vector<1x4x256xf32>
    %157 = vector.shape_cast %156 : vector<1x4x256xf32> to vector<4x256xf32>
    %158 = vector.broadcast %1 : vector<1x256xf32> to vector<4x256xf32>
    %159 = arith.mulf %157, %158 : vector<4x256xf32>
    %c40_158 = arith.constant 40 : index
    %c0_159 = arith.constant 0 : index
    %160 = vector.load %arg8[%c40_158, %c0_159] : memref<72x512xf32, #tpu.memory_space<vmem>>, vector<4x256xf32>
    tpu.vector_store %arg8[%c40_158, %c0_159], %159 {strides = array<i32>} : memref<72x512xf32, #tpu.memory_space<vmem>>, vector<4x256xf32>,
    %c1_160 = arith.constant 1 : index
    %c0_161 = arith.constant 0 : index
    %c129_162 = arith.constant 129 : index
    %161 = vector.load %arg9[%c1_160, %c0_161, %c129_162] : memref<2x4x512xf32, #tpu.memory_space<vmem>>, vector<1x4x256xf32>
    %162 = vector.shape_cast %161 : vector<1x4x256xf32> to vector<4x256xf32>
    %163 = vector.broadcast %1 : vector<1x256xf32> to vector<4x256xf32>
    %164 = arith.mulf %162, %163 : vector<4x256xf32>
    %c40_163 = arith.constant 40 : index
    %c256_164 = arith.constant 256 : index
    %165 = vector.load %arg8[%c40_163, %c256_164] : memref<72x512xf32, #tpu.memory_space<vmem>>, vector<4x256xf32>
    tpu.vector_store %arg8[%c40_163, %c256_164], %164 {strides = array<i32>} : memref<72x512xf32, #tpu.memory_space<vmem>>, vector<4x256xf32>,
    %c0_165 = arith.constant 0 : index
    %c0_166 = arith.constant 0 : index
    %c143_167 = arith.constant 143 : index
    %166 = vector.load %arg9[%c0_165, %c0_166, %c143_167] : memref<2x4x512xf32, #tpu.memory_space<vmem>>, vector<1x4x256xf32>
    %167 = vector.shape_cast %166 : vector<1x4x256xf32> to vector<4x256xf32>
    %168 = vector.broadcast %0 : vector<1x256xf32> to vector<4x256xf32>
    %169 = arith.mulf %167, %168 : vector<4x256xf32>
    %c48_168 = arith.constant 48 : index
    %c0_169 = arith.constant 0 : index
    %170 = vector.load %arg8[%c48_168, %c0_169] : memref<72x512xf32, #tpu.memory_space<vmem>>, vector<4x256xf32>
    tpu.vector_store %arg8[%c48_168, %c0_169], %169 {strides = array<i32>} : memref<72x512xf32, #tpu.memory_space<vmem>>, vector<4x256xf32>,
    %c1_170 = arith.constant 1 : index
    %c0_171 = arith.constant 0 : index
    %c143_172 = arith.constant 143 : index
    %171 = vector.load %arg9[%c1_170, %c0_171, %c143_172] : memref<2x4x512xf32, #tpu.memory_space<vmem>>, vector<1x4x256xf32>
    %172 = vector.shape_cast %171 : vector<1x4x256xf32> to vector<4x256xf32>
    %173 = vector.broadcast %0 : vector<1x256xf32> to vector<4x256xf32>
    %174 = arith.mulf %172, %173 : vector<4x256xf32>
    %c48_173 = arith.constant 48 : index
    %c256_174 = arith.constant 256 : index
    %175 = vector.load %arg8[%c48_173, %c256_174] : memref<72x512xf32, #tpu.memory_space<vmem>>, vector<4x256xf32>
    tpu.vector_store %arg8[%c48_173, %c256_174], %174 {strides = array<i32>} : memref<72x512xf32, #tpu.memory_space<vmem>>, vector<4x256xf32>,
    %c0_175 = arith.constant 0 : index
    %c0_176 = arith.constant 0 : index
    %c144_177 = arith.constant 144 : index
    %176 = vector.load %arg9[%c0_175, %c0_176, %c144_177] : memref<2x4x512xf32, #tpu.memory_space<vmem>>, vector<1x4x256xf32>
    %177 = vector.shape_cast %176 : vector<1x4x256xf32> to vector<4x256xf32>
    %c56_178 = arith.constant 56 : index
    %c0_179 = arith.constant 0 : index
    %178 = vector.load %arg8[%c56_178, %c0_179] : memref<72x512xf32, #tpu.memory_space<vmem>>, vector<4x256xf32>
    tpu.vector_store %arg8[%c56_178, %c0_179], %177 {strides = array<i32>} : memref<72x512xf32, #tpu.memory_space<vmem>>, vector<4x256xf32>,
    %c1_180 = arith.constant 1 : index
    %c0_181 = arith.constant 0 : index
    %c144_182 = arith.constant 144 : index
    %179 = vector.load %arg9[%c1_180, %c0_181, %c144_182] : memref<2x4x512xf32, #tpu.memory_space<vmem>>, vector<1x4x256xf32>
    %180 = vector.shape_cast %179 : vector<1x4x256xf32> to vector<4x256xf32>
    %c56_183 = arith.constant 56 : index
    %c256_184 = arith.constant 256 : index
    %181 = vector.load %arg8[%c56_183, %c256_184] : memref<72x512xf32, #tpu.memory_space<vmem>>, vector<4x256xf32>
    tpu.vector_store %arg8[%c56_183, %c256_184], %180 {strides = array<i32>} : memref<72x512xf32, #tpu.memory_space<vmem>>, vector<4x256xf32>,
    %c0_185 = arith.constant 0 : index
    %c0_186 = arith.constant 0 : index
    %c145_187 = arith.constant 145 : index
    %182 = vector.load %arg9[%c0_185, %c0_186, %c145_187] : memref<2x4x512xf32, #tpu.memory_space<vmem>>, vector<1x4x256xf32>
    %183 = vector.shape_cast %182 : vector<1x4x256xf32> to vector<4x256xf32>
    %184 = vector.broadcast %1 : vector<1x256xf32> to vector<4x256xf32>
    %185 = arith.mulf %183, %184 : vector<4x256xf32>
    %c64_188 = arith.constant 64 : index
    %c0_189 = arith.constant 0 : index
    %186 = vector.load %arg8[%c64_188, %c0_189] : memref<72x512xf32, #tpu.memory_space<vmem>>, vector<4x256xf32>
    tpu.vector_store %arg8[%c64_188, %c0_189], %185 {strides = array<i32>} : memref<72x512xf32, #tpu.memory_space<vmem>>, vector<4x256xf32>,
    %c1_190 = arith.constant 1 : index
    %c0_191 = arith.constant 0 : index
    %c145_192 = arith.constant 145 : index
    %187 = vector.load %arg9[%c1_190, %c0_191, %c145_192] : memref<2x4x512xf32, #tpu.memory_space<vmem>>, vector<1x4x256xf32>
    %188 = vector.shape_cast %187 : vector<1x4x256xf32> to vector<4x256xf32>
    %189 = vector.broadcast %1 : vector<1x256xf32> to vector<4x256xf32>
    %190 = arith.mulf %188, %189 : vector<4x256xf32>
    %c64_193 = arith.constant 64 : index
    %c256_194 = arith.constant 256 : index
    %191 = vector.load %arg8[%c64_193, %c256_194] : memref<72x512xf32, #tpu.memory_space<vmem>>, vector<4x256xf32>
    tpu.vector_store %arg8[%c64_193, %c256_194], %190 {strides = array<i32>} : memref<72x512xf32, #tpu.memory_space<vmem>>, vector<4x256xf32>,
    %c0_195 = arith.constant 0 : index
    %c0_196 = arith.constant 0 : index
    %192 = vector.load %arg4[%c0_195, %c0_196] : memref<4x72xf32, #tpu.memory_space<vmem>>, vector<4x72xf32>
    %c0_197 = arith.constant 0 : index
    %c0_198 = arith.constant 0 : index
    %193 = vector.load %arg8[%c0_197, %c0_198] : memref<72x512xf32, #tpu.memory_space<vmem>>, vector<72x512xf32>
    %cst_199 = arith.constant dense<0.000000e+00> : vector<4x512xf32>
    %194 = tpu.matmul %192, %193, %cst_199 {dimension_numbers = #tpu.dot_dimension_numbers<[1], [0], [0], [1], [0, 0, 1, 1], [], []>} : vector<4x72xf32>, vector<72x512xf32>, vector<4x512xf32> -> vector<4x512xf32>
    %c0_200 = arith.constant 0 : index
    %c0_201 = arith.constant 0 : index
    %195 = vector.load %arg6[%c0_200, %c0_201] : memref<4x1xf32, #tpu.memory_space<vmem>>, vector<4x1xf32>
    %196 = vector.broadcast %195 : vector<4x1xf32> to vector<4x512xf32>
    %197 = arith.addf %194, %196 : vector<4x512xf32>
    %c0_202 = arith.constant 0 : index
    %c0_203 = arith.constant 0 : index
    %c128_204 = arith.constant 128 : index
    %198 = vector.load %arg1[%c0_202, %c0_203, %c128_204] : memref<2x4x512xf32, #tpu.memory_space<vmem>>, vector<1x4x256xf32>
    %199 = vector.shape_cast %198 : vector<1x4x256xf32> to vector<4x256xf32>
    %200 = vector.extract_strided_slice %197 {offsets = [0, 0], sizes = [4, 256], strides = [1, 1]} : vector<4x512xf32> to vector<4x256xf32>
    %201 = arith.addf %200, %199 : vector<4x256xf32>
    %cst_205 = arith.constant 0.000000e+00 : f32
    %202 = vector.broadcast %cst_205 : f32 to vector<4x256xf32>
    %203 = arith.maximumf %201, %202 : vector<4x256xf32>
    %c0_206 = arith.constant 0 : index
    %c0_207 = arith.constant 0 : index
    %c0_208 = arith.constant 0 : index
    %204 = vector.load %arg7[%c0_206, %c0_207, %c0_208] : memref<2x4x256xf32, #tpu.memory_space<vmem>>, vector<1x4x256xf32>
    %205 = vector.shape_cast %204 : vector<1x4x256xf32> to vector<4x256xf32>
    %206 = vector.shape_cast %203 : vector<4x256xf32> to vector<1x4x256xf32>
    tpu.vector_store %arg7[%c0_206, %c0_207, %c0_208], %206 {strides = array<i32>} : memref<2x4x256xf32, #tpu.memory_space<vmem>>, vector<1x4x256xf32>,
    %c1_209 = arith.constant 1 : index
    %c0_210 = arith.constant 0 : index
    %c128_211 = arith.constant 128 : index
    %207 = vector.load %arg1[%c1_209, %c0_210, %c128_211] : memref<2x4x512xf32, #tpu.memory_space<vmem>>, vector<1x4x256xf32>
    %208 = vector.shape_cast %207 : vector<1x4x256xf32> to vector<4x256xf32>
    %209 = vector.extract_strided_slice %197 {offsets = [0, 256], sizes = [4, 256], strides = [1, 1]} : vector<4x512xf32> to vector<4x256xf32>
    %210 = arith.addf %209, %208 : vector<4x256xf32>
    %cst_212 = arith.constant 0.000000e+00 : f32
    %211 = vector.broadcast %cst_212 : f32 to vector<4x256xf32>
    %212 = arith.maximumf %210, %211 : vector<4x256xf32>
    %c1_213 = arith.constant 1 : index
    %c0_214 = arith.constant 0 : index
    %c0_215 = arith.constant 0 : index
    %213 = vector.load %arg7[%c1_213, %c0_214, %c0_215] : memref<2x4x256xf32, #tpu.memory_space<vmem>>, vector<1x4x256xf32>
    %214 = vector.shape_cast %213 : vector<1x4x256xf32> to vector<4x256xf32>
    %215 = vector.shape_cast %212 : vector<4x256xf32> to vector<1x4x256xf32>
    tpu.vector_store %arg7[%c1_213, %c0_214, %c0_215], %215 {strides = array<i32>} : memref<2x4x256xf32, #tpu.memory_space<vmem>>, vector<1x4x256xf32>,
    return
  }
  func.func @transform_0(%arg0: i32) -> (i32, i32, i32) {
    %c0_i32 = arith.constant 0 : i32
    %c0_i32_0 = arith.constant 0 : i32
    %c0_i32_1 = arith.constant 0 : i32
    %c0_i32_2 = arith.constant 0 : i32
    return %c0_i32, %c0_i32_0, %c0_i32_1 : i32, i32, i32
  }
  func.func @transform_1(%arg0: i32) -> (i32, i32) {
    %c0_i32 = arith.constant 0 : i32
    %c0_i32_0 = arith.constant 0 : i32
    %c0_i32_1 = arith.constant 0 : i32
    return %c0_i32, %c0_i32_0 : i32, i32
  }
  func.func @transform_2(%arg0: i32) -> (i32, i32) {
    %c0_i32 = arith.constant 0 : i32
    %c0_i32_0 = arith.constant 0 : i32
    %c0_i32_1 = arith.constant 0 : i32
    return %c0_i32, %c0_i32_0 : i32, i32
  }
  func.func @transform_3(%arg0: i32) -> (i32, i32) {
    %c0_i32 = arith.constant 0 : i32
    %c0_i32_0 = arith.constant 0 : i32
    %c0_i32_1 = arith.constant 0 : i32
    return %c0_i32, %c0_i32_0 : i32, i32
  }
  func.func @transform_4(%arg0: i32) -> (i32, i32) {
    %c0_i32 = arith.constant 0 : i32
    %c0_i32_0 = arith.constant 0 : i32
    %c0_i32_1 = arith.constant 0 : i32
    return %c0_i32, %c0_i32_0 : i32, i32
  }
  func.func @transform_5(%arg0: i32) -> (i32, i32) {
    %c0_i32 = arith.constant 0 : i32
    %c0_i32_0 = arith.constant 0 : i32
    %c0_i32_1 = arith.constant 0 : i32
    return %c0_i32, %c0_i32_0 : i32, i32
  }
  func.func @transform_6(%arg0: i32) -> (i32, i32, i32) {
    %c0_i32 = arith.constant 0 : i32
    %c0_i32_0 = arith.constant 0 : i32
    %c0_i32_1 = arith.constant 0 : i32
    %c0_i32_2 = arith.constant 0 : i32
    return %c0_i32, %c0_i32_0, %c0_i32_1 : i32, i32, i32
  }
}

</mosaic_0001>

<llo_original>
// kernel: resnet_block_forward.1
$region0: #{resnet_block_forward.1}
  #allocation0 [shape = 'u32[]', space=smem, size = 0x4, offset = 0x4, fixed_abs, tag = 'smem constant byte address 0x4 - core index']
  #allocation1 [shape = 'u32[144,128]{1,0:T(1,128)}', space=vmem, size = 0x12000, scoped, tag = 'internal scratch']
  #allocation2 [shape = 'f32[72,512]{1,0:T(8,128)}', space=vmem, size = 0x24000, scoped, tag = 'scratch operand']
  #allocation3 [shape = 'f32[2,4,512]{2,1,0:T(4,128)}', space=vmem, size = 0x4000, scoped, tag = 'scratch operand']
  %s0 = inlined_call_operand.hbm [shape: f32[2,4,512], index: 0, kind: input, shape index: {}]
  %s1 = inlined_call_operand.hbm [shape: f32[2,256], index: 1, kind: input, shape index: {}]
  %s2 = inlined_call_operand.hbm [shape: f32[4,72], index: 2, kind: input, shape index: {}]
  %s3 = inlined_call_operand.hbm [shape: f32[4,72], index: 3, kind: input, shape index: {}]
  %s4 = inlined_call_operand.hbm [shape: f32[4,1], index: 4, kind: input, shape index: {}]
  %s5 = inlined_call_operand.hbm [shape: f32[4,1], index: 5, kind: input, shape index: {}]
  %s6 = inlined_call_operand.hbm [shape: f32[2,4,256], index: 6, kind: output, shape index: {}]
  %s7 = sld [smem:[#allocation0]]
  $region58: #{resnet_block_forward.1} parent=0
    _
  %s9 = ssub.s32 1, %s7
  %s10 = scalar_select 0, %s9, %s7
  $region1: #{resnet_block_forward.1} parent=0
    #allocation4 [shape = 'u8[16384]{0}', space=vmem, size = 0x4000, scoped, tag = 'input window, operand 0, single buffered']
    #allocation5 [shape = 's32[1]{0}', space=sflag, size = 0x4, scoped, tag = 'scoped memory for resnet_block_forward.1']
    #allocation6 [shape = 's32[1]{0}', space=sflag, size = 0x4, scoped, tag = 'scoped memory for resnet_block_forward.1']
    #allocation7 [shape = 'u8[2048]{0}', space=vmem, size = 0x800, scoped, tag = 'input window, operand 1, single buffered']
    #allocation8 [shape = 's32[1]{0}', space=sflag, size = 0x4, scoped, tag = 'scoped memory for resnet_block_forward.1']
    #allocation9 [shape = 'u8[2048]{0}', space=vmem, size = 0x800, scoped, tag = 'input window, operand 2, single buffered']
    #allocation10 [shape = 'u8[2048]{0}', space=vmem, size = 0x800, scoped, tag = 'input window, operand 3, single buffered']
    #allocation11 [shape = 's32[1]{0}', space=sflag, size = 0x4, scoped, tag = 'scoped memory for resnet_block_forward.1']
    #allocation12 [shape = 'u8[2048]{0}', space=vmem, size = 0x800, scoped, tag = 'input window, operand 4, single buffered']
    #allocation13 [shape = 'u8[2048]{0}', space=vmem, size = 0x800, scoped, tag = 'input window, operand 5, single buffered']
    #allocation14 [shape = 's32[1]{0}', space=sflag, size = 0x4, scoped, tag = 'scoped memory for resnet_block_forward.1']
    #allocation15 [shape = 'u8[8192]{0}', space=vmem, size = 0x2000, scoped, tag = 'output window, operand 0, single buffered']
    %11 = vsyncpa [#allocation5], 0
    %12 = vsyncpa [#allocation8], 0
    %13 = vsyncpa [#allocation11], 0
    %14 = vsyncpa [#allocation14], 0
    %15 = vsyncpa [#allocation6], 0
    // Predicated region
    $region2: #{resnet_block_forward.1} parent=1 // pred_check
      _
    $region3: #{resnet_block_forward.1} parent=1 // pred_check_branch
      %17 = sbr.rel (0) target = $region5
    $region4: #{resnet_block_forward.1} parent=1 // pred_region
      %s19 = ssub.s32 512, 512
      %20 = vsyncadd [#allocation5], %s19
      %s21 = sshll.u32 [#allocation4], 4
      %s22 = int_to_ptr.vmem [resolvable:$true] %s21
      %27 = dma.hbm_to_vmem [thread:$0]  %s0, 512, %s22, [#allocation5], 256, 256, 16
    $region5: #{resnet_block_forward.1} parent=1 // pred_fallthru
      _
    // Predicated region
    $region6: #{resnet_block_forward.1} parent=1 // pred_check
      _
    $region7: #{resnet_block_forward.1} parent=1 // pred_check_branch
      %29 = sbr.rel (0) target = $region9
    $region8: #{resnet_block_forward.1} parent=1 // pred_region
      %s31 = ssub.s32 64, 64
      %32 = vsyncadd [#allocation8], %s31
      %s34 = sshll.u32 [#allocation7], 4
      %s35 = int_to_ptr.vmem [resolvable:$true] %s34
      %37 = dma.hbm_to_vmem [thread:$0]  %s1, 64, %s35, [#allocation8]
    $region9: #{resnet_block_forward.1} parent=1 // pred_fallthru
      _
    // Predicated region
    $region10: #{resnet_block_forward.1} parent=1 // pred_check
      _
    $region11: #{resnet_block_forward.1} parent=1 // pred_check_branch
      %39 = sbr.rel (0) target = $region13
    $region12: #{resnet_block_forward.1} parent=1 // pred_region
      %s41 = ssub.s32 64, 64
      %42 = vsyncadd [#allocation8], %s41
      %s44 = sshll.u32 [#allocation9], 4
      %s45 = int_to_ptr.vmem [resolvable:$true] %s44
      %47 = dma.hbm_to_vmem [thread:$0]  %s2, 64, %s45, [#allocation8]
    $region13: #{resnet_block_forward.1} parent=1 // pred_fallthru
      _
    // Predicated region
    $region14: #{resnet_block_forward.1} parent=1 // pred_check
      _
    $region15: #{resnet_block_forward.1} parent=1 // pred_check_branch
      %49 = sbr.rel (0) target = $region17
    $region16: #{resnet_block_forward.1} parent=1 // pred_region
      %s51 = ssub.s32 64, 64
      %52 = vsyncadd [#allocation11], %s51
      %s54 = sshll.u32 [#allocation10], 4
      %s55 = int_to_ptr.vmem [resolvable:$true] %s54
      %57 = dma.hbm_to_vmem [thread:$0]  %s3, 64, %s55, [#allocation11]
    $region17: #{resnet_block_forward.1} parent=1 // pred_fallthru
      _
    // Predicated region
    $region18: #{resnet_block_forward.1} parent=1 // pred_check
      _
    $region19: #{resnet_block_forward.1} parent=1 // pred_check_branch
      %59 = sbr.rel (0) target = $region21
    $region20: #{resnet_block_forward.1} parent=1 // pred_region
      %s61 = ssub.s32 64, 64
      %62 = vsyncadd [#allocation11], %s61
      %s64 = sshll.u32 [#allocation12], 4
      %s65 = int_to_ptr.vmem [resolvable:$true] %s64
      %67 = dma.hbm_to_vmem [thread:$0]  %s4, 64, %s65, [#allocation11]
    $region21: #{resnet_block_forward.1} parent=1 // pred_fallthru
      _
    // Predicated region
    $region22: #{resnet_block_forward.1} parent=1 // pred_check
      _
    $region23: #{resnet_block_forward.1} parent=1 // pred_check_branch
      %69 = sbr.rel (0) target = $region25
    $region24: #{resnet_block_forward.1} parent=1 // pred_region
      %s71 = ssub.s32 64, 64
      %72 = vsyncadd [#allocation14], %s71
      %s74 = sshll.u32 [#allocation13], 4
      %s75 = int_to_ptr.vmem [resolvable:$true] %s74
      %77 = dma.hbm_to_vmem [thread:$0]  %s5, 64, %s75, [#allocation14]
    $region25: #{resnet_block_forward.1} parent=1 // pred_fallthru
      _
    // Predicated region
    $region26: #{resnet_block_forward.1} parent=1 // pred_check
      _
    $region27: #{resnet_block_forward.1} parent=1 // pred_check_branch
      %79 = sbr.rel (0) target = $region29
    $region28: #{resnet_block_forward.1} parent=1 // pred_region
      %80 = dma.done [#allocation5], 512
    $region29: #{resnet_block_forward.1} parent=1 // pred_fallthru
      _
    // Predicated region
    $region30: #{resnet_block_forward.1} parent=1 // pred_check
      _
    $region31: #{resnet_block_forward.1} parent=1 // pred_check_branch
      %82 = sbr.rel (0) target = $region33
    $region32: #{resnet_block_forward.1} parent=1 // pred_region
      %83 = dma.done [#allocation8], 64
    $region33: #{resnet_block_forward.1} parent=1 // pred_fallthru
      _
    // Predicated region
    $region34: #{resnet_block_forward.1} parent=1 // pred_check
      _
    $region35: #{resnet_block_forward.1} parent=1 // pred_check_branch
      %85 = sbr.rel (0) target = $region37
    $region36: #{resnet_block_forward.1} parent=1 // pred_region
      %86 = dma.done [#allocation8], 64
    $region37: #{resnet_block_forward.1} parent=1 // pred_fallthru
      _
    // Predicated region
    $region38: #{resnet_block_forward.1} parent=1 // pred_check
      _
    $region39: #{resnet_block_forward.1} parent=1 // pred_check_branch
      %88 = sbr.rel (0) target = $region41
    $region40: #{resnet_block_forward.1} parent=1 // pred_region
      %89 = dma.done [#allocation11], 64
    $region41: #{resnet_block_forward.1} parent=1 // pred_fallthru
      _
    // Predicated region
    $region42: #{resnet_block_forward.1} parent=1 // pred_check
      _
    $region43: #{resnet_block_forward.1} parent=1 // pred_check_branch
      %91 = sbr.rel (0) target = $region45
    $region44: #{resnet_block_forward.1} parent=1 // pred_region
      %92 = dma.done [#allocation11], 64
    $region45: #{resnet_block_forward.1} parent=1 // pred_fallthru
      _
    // Predicated region
    $region46: #{resnet_block_forward.1} parent=1 // pred_check
      _
    $region47: #{resnet_block_forward.1} parent=1 // pred_check_branch
      %94 = sbr.rel (0) target = $region49
    $region48: #{resnet_block_forward.1} parent=1 // pred_region
      %95 = dma.done [#allocation14], 64
    $region49: #{resnet_block_forward.1} parent=1 // pred_fallthru
      _
    %v96 = vld [vmem:[#allocation7] ss:$2 sm:$0x3]
    %s97 = scalar_lea.vmem [#allocation7], 1
    %v98 = vld [vmem:[%s97] ss:$2 sm:$0x3]
    %99 = vst [vmem:[#allocation2] sm:$0xff] 0.0
    %100 = vst [vmem:[#allocation2 + $0x8] sm:$0xff] 0.0
    %101 = vst [vmem:[#allocation2 + $0x10] sm:$0xff] 0.0
    %102 = vst [vmem:[#allocation2 + $0x18] sm:$0xff] 0.0
    %103 = vst [vmem:[#allocation2 + $0x20] sm:$0xff] 0.0
    %104 = vst [vmem:[#allocation2 + $0x28] sm:$0xff] 0.0
    %105 = vst [vmem:[#allocation2 + $0x30] sm:$0xff] 0.0
    %106 = vst [vmem:[#allocation2 + $0x38] sm:$0xff] 0.0
    %107 = vst [vmem:[#allocation2 + $0x40] sm:$0xff] 0.0
    %108 = vst [vmem:[#allocation2 + $0x48] sm:$0xff] 0.0
    %109 = vst [vmem:[#allocation2 + $0x50] sm:$0xff] 0.0
    %110 = vst [vmem:[#allocation2 + $0x58] sm:$0xff] 0.0
    %111 = vst [vmem:[#allocation2 + $0x60] sm:$0xff] 0.0
    %112 = vst [vmem:[#allocation2 + $0x68] sm:$0xff] 0.0
    %113 = vst [vmem:[#allocation2 + $0x70] sm:$0xff] 0.0
    %114 = vst [vmem:[#allocation2 + $0x78] sm:$0xff] 0.0
    %115 = vst [vmem:[#allocation2 + $0x80] sm:$0xff] 0.0
    %116 = vst [vmem:[#allocation2 + $0x88] sm:$0xff] 0.0
    %117 = vst [vmem:[#allocation2 + $0x90] sm:$0xff] 0.0
    %118 = vst [vmem:[#allocation2 + $0x98] sm:$0xff] 0.0
    %119 = vst [vmem:[#allocation2 + $0xa0] sm:$0xff] 0.0
    %120 = vst [vmem:[#allocation2 + $0xa8] sm:$0xff] 0.0
    %121 = vst [vmem:[#allocation2 + $0xb0] sm:$0xff] 0.0
    %122 = vst [vmem:[#allocation2 + $0xb8] sm:$0xff] 0.0
    %123 = vst [vmem:[#allocation2 + $0xc0] sm:$0xff] 0.0
    %124 = vst [vmem:[#allocation2 + $0xc8] sm:$0xff] 0.0
    %125 = vst [vmem:[#allocation2 + $0xd0] sm:$0xff] 0.0
    %126 = vst [vmem:[#allocation2 + $0xd8] sm:$0xff] 0.0
    %127 = vst [vmem:[#allocation2 + $0xe0] sm:$0xff] 0.0
    %128 = vst [vmem:[#allocation2 + $0xe8] sm:$0xff] 0.0
    %129 = vst [vmem:[#allocation2 + $0xf0] sm:$0xff] 0.0
    %130 = vst [vmem:[#allocation2 + $0xf8] sm:$0xff] 0.0
    %131 = vst [vmem:[#allocation2 + $0x100] sm:$0xff] 0.0
    %132 = vst [vmem:[#allocation2 + $0x108] sm:$0xff] 0.0
    %133 = vst [vmem:[#allocation2 + $0x110] sm:$0xff] 0.0
    %134 = vst [vmem:[#allocation2 + $0x118] sm:$0xff] 0.0
    %135 = vst [vmem:[#allocation3] sm:$0xf] 0.0
    %136 = vst [vmem:[#allocation3 + $0xc] sm:$0xf] 0.0
    %s137 = scalar_lea.vmem [#allocation3], 16
    %138 = vst [vmem:[%s137] sm:$0xf] 0.0
    %139 = vst [vmem:[%s137 + $0xc] sm:$0xf] 0.0
    %v140 = vld [vmem:[#allocation4] sm:$0xff]
    %v141 = vld [vmem:[#allocation4 + $0x8] sm:$0xf]
    %v143 = vlaneseq
    %v144 = vshrl.u32 %v143, 7
    %v145 = vsub.s32 0, %v144
    %v146 = vrot.slane %v96, %v145
    %v147 = vlaneseq
    %v148 = vshrl.u32 %v147, 7
    %v149 = vsub.s32 1, %v148
    %v150 = vrot.slane %v96, %v149
    %v151 = vcombine.low %v146, %v150
    %152 = vrot.lane.b32.xlu0 %v151, 111
    %v153 = vpop.permute.xlu0 %152
    %v154 = vrot.slane %v153, 4
    %vm155 = vcmask 908288
    %v156 = vsel %vm155, %v154, %v153
    %v159 = vmul.f32 %v140, %v156
    %v160 = vmul.f32 %v141, %v154
    %v163 = vcombine.high %v159, %v159
    %164 = vrot.lane.b32.xlu0 %v159, 17
    %v165 = vpop.permute.xlu0 %164
    %166 = vrot.lane.b32.xlu0 %v163, 17
    %v167 = vpop.permute.xlu0 %166
    %168 = vrot.lane.b32.xlu0 %v160, 17
    %v169 = vpop.permute.xlu0 %168
    %vm170 = vcmask 138240
    %v171 = vsel %vm170, %v165, %v167
    %v172 = vsel %vm170, %v167, %v169
    %175 = vst [vmem:[#allocation2] sm:$0xf] %v171
    %176 = vst [vmem:[#allocation2 + $0x8] sm:$0xf] %v172
    %s177 = scalar_lea.vmem [#allocation4], 16
    %v178 = vld [vmem:[%s177] sm:$0xff]
    %v179 = vld [vmem:[%s177 + $0x8] sm:$0xf]
    %v180 = vmul.f32 %v178, %v156
    %v181 = vmul.f32 %v179, %v154
    %v184 = vcombine.high %v180, %v180
    %185 = vrot.lane.b32.xlu0 %v180, 17
    %v186 = vpop.permute.xlu0 %185
    %187 = vrot.lane.b32.xlu0 %v184, 17
    %v188 = vpop.permute.xlu0 %187
    %189 = vrot.lane.b32.xlu0 %v181, 17
    %v190 = vpop.permute.xlu0 %189
    %v191 = vsel %vm170, %v186, %v188
    %v192 = vsel %vm170, %v188, %v190
    %195 = vst [vmem:[#allocation2 + $0x10] sm:$0xf] %v191
    %196 = vst [vmem:[#allocation2 + $0x18] sm:$0xf] %v192
    %v197 = vld [vmem:[#allocation4] sm:$0xff]
    %v198 = vld [vmem:[#allocation4 + $0x8] sm:$0xf]
    %v201 = vcombine.high %v197, %v197
    %202 = vrot.lane.b32.xlu0 %v197, 16
    %v203 = vpop.permute.xlu0 %202
    %204 = vrot.lane.b32.xlu0 %v201, 16
    %v205 = vpop.permute.xlu0 %204
    %206 = vrot.lane.b32.xlu0 %v198, 16
    %v207 = vpop.permute.xlu0 %206
    %vm208 = vcmask 130048
    %v209 = vsel %vm208, %v203, %v205
    %v210 = vsel %vm208, %v205, %v207
    %213 = vst [vmem:[#allocation2 + $0x20] sm:$0xf] %v209
    %214 = vst [vmem:[#allocation2 + $0x28] sm:$0xf] %v210
    %v215 = vld [vmem:[%s177] sm:$0xff]
    %v216 = vld [vmem:[%s177 + $0x8] sm:$0xf]
    %v219 = vcombine.high %v215, %v215
    %220 = vrot.lane.b32.xlu0 %v215, 16
    %v221 = vpop.permute.xlu0 %220
    %222 = vrot.lane.b32.xlu0 %v219, 16
    %v223 = vpop.permute.xlu0 %222
    %224 = vrot.lane.b32.xlu0 %v216, 16
    %v225 = vpop.permute.xlu0 %224
    %v226 = vsel %vm208, %v221, %v223
    %v227 = vsel %vm208, %v223, %v225
    %230 = vst [vmem:[#allocation2 + $0x30] sm:$0xf] %v226
    %231 = vst [vmem:[#allocation2 + $0x38] sm:$0xf] %v227
    %v232 = vld [vmem:[#allocation4] sm:$0xff]
    %v233 = vld [vmem:[#allocation4 + $0x8] sm:$0xf]
    %v235 = vlaneseq
    %v236 = vshrl.u32 %v235, 7
    %v237 = vsub.s32 0, %v236
    %v238 = vrot.slane %v98, %v237
    %v239 = vlaneseq
    %v240 = vshrl.u32 %v239, 7
    %v241 = vsub.s32 1, %v240
    %v242 = vrot.slane %v98, %v241
    %v243 = vcombine.low %v238, %v242
    %244 = vrot.lane.b32.xlu0 %v243, 113
    %v245 = vpop.permute.xlu0 %244
    %v246 = vrot.slane %v245, 4
    %vm247 = vcmask 924672
    %v248 = vsel %vm247, %v246, %v245
    %v251 = vmul.f32 %v232, %v248
    %v252 = vmul.f32 %v233, %v246
    %v255 = vcombine.high %v251, %v251
    %256 = vrot.lane.b32.xlu0 %v251, 15
    %v257 = vpop.permute.xlu0 %256
    %258 = vrot.lane.b32.xlu0 %v255, 15
    %v259 = vpop.permute.xlu0 %258
    %260 = vrot.lane.b32.xlu0 %v252, 15
    %v261 = vpop.permute.xlu0 %260
    %vm262 = vcmask 121856
    %v263 = vsel %vm262, %v257, %v259
    %v264 = vsel %vm262, %v259, %v261
    %267 = vst [vmem:[#allocation2 + $0x40] sm:$0xf] %v263
    %268 = vst [vmem:[#allocation2 + $0x48] sm:$0xf] %v264
    %v269 = vld [vmem:[%s177] sm:$0xff]
    %v270 = vld [vmem:[%s177 + $0x8] sm:$0xf]
    %v271 = vmul.f32 %v269, %v248
    %v272 = vmul.f32 %v270, %v246
    %v275 = vcombine.high %v271, %v271
    %276 = vrot.lane.b32.xlu0 %v271, 15
    %v277 = vpop.permute.xlu0 %276
    %278 = vrot.lane.b32.xlu0 %v275, 15
    %v279 = vpop.permute.xlu0 %278
    %280 = vrot.lane.b32.xlu0 %v272, 15
    %v281 = vpop.permute.xlu0 %280
    %v282 = vsel %vm262, %v277, %v279
    %v283 = vsel %vm262, %v279, %v281
    %286 = vst [vmem:[#allocation2 + $0x50] sm:$0xf] %v282
    %287 = vst [vmem:[#allocation2 + $0x58] sm:$0xf] %v283
    %v288 = vld [vmem:[#allocation4] sm:$0xff]
    %v289 = vld [vmem:[#allocation4 + $0x8] sm:$0xf]
    %290 = vrot.lane.b32.xlu0 %v151, 127
    %v291 = vpop.permute.xlu0 %290
    %v292 = vrot.slane %v291, 4
    %vm293 = vcmask 1039360
    %v294 = vsel %vm293, %v292, %v291
    %v297 = vmul.f32 %v288, %v294
    %v298 = vmul.f32 %v289, %v292
    %v301 = vcombine.high %v297, %v297
    %302 = vrot.lane.b32.xlu0 %v297, 1
    %v303 = vpop.permute.xlu0 %302
    %304 = vrot.lane.b32.xlu0 %v301, 1
    %v305 = vpop.permute.xlu0 %304
    %306 = vrot.lane.b32.xlu0 %v298, 1
    %v307 = vpop.permute.xlu0 %306
    %vm308 = vcmask 7168
    %v309 = vsel %vm308, %v303, %v305
    %v310 = vsel %vm308, %v305, %v307
    %313 = vst [vmem:[#allocation2 + $0x60] sm:$0xf] %v309
    %314 = vst [vmem:[#allocation2 + $0x68] sm:$0xf] %v310
    %v315 = vld [vmem:[%s177] sm:$0xff]
    %v316 = vld [vmem:[%s177 + $0x8] sm:$0xf]
    %v317 = vmul.f32 %v315, %v294
    %v318 = vmul.f32 %v316, %v292
    %v321 = vcombine.high %v317, %v317
    %322 = vrot.lane.b32.xlu0 %v317, 1
    %v323 = vpop.permute.xlu0 %322
    %324 = vrot.lane.b32.xlu0 %v321, 1
    %v325 = vpop.permute.xlu0 %324
    %326 = vrot.lane.b32.xlu0 %v318, 1
    %v327 = vpop.permute.xlu0 %326
    %v328 = vsel %vm308, %v323, %v325
    %v329 = vsel %vm308, %v325, %v327
    %332 = vst [vmem:[#allocation2 + $0x70] sm:$0xf] %v328
    %333 = vst [vmem:[#allocation2 + $0x78] sm:$0xf] %v329
    %v334 = vld [vmem:[#allocation4 + $0x4] sm:$0xff]
    %v336 = vcombine.high %v334, %v334
    %338 = vst [vmem:[#allocation2 + $0x80] sm:$0xf] %v334
    %339 = vst [vmem:[#allocation2 + $0x88] sm:$0xf] %v336
    %v340 = vld [vmem:[%s177 + $0x4] sm:$0xff]
    %v342 = vcombine.high %v340, %v340
    %344 = vst [vmem:[#allocation2 + $0x90] sm:$0xf] %v340
    %345 = vst [vmem:[#allocation2 + $0x98] sm:$0xf] %v342
    %v346 = vld [vmem:[#allocation4 + $0x4] sm:$0xff]
    %v347 = vld [vmem:[#allocation4 + $0xc] sm:$0xf]
    %348 = vrot.lane.b32.xlu0 %v243, 1
    %v349 = vpop.permute.xlu0 %348
    %v350 = vrot.slane %v349, 4
    %v351 = vsel %vm308, %v350, %v349
    %v354 = vmul.f32 %v346, %v351
    %v355 = vmul.f32 %v347, %v350
    %v358 = vcombine.high %v354, %v354
    %359 = vrot.lane.b32.xlu0 %v354, 127
    %v360 = vpop.permute.xlu0 %359
    %361 = vrot.lane.b32.xlu0 %v358, 127
    %v362 = vpop.permute.xlu0 %361
    %363 = vrot.lane.b32.xlu0 %v355, 127
    %v364 = vpop.permute.xlu0 %363
    %v365 = vsel %vm293, %v360, %v362
    %v366 = vsel %vm293, %v362, %v364
    %369 = vst [vmem:[#allocation2 + $0xa0] sm:$0xf] %v365
    %370 = vst [vmem:[#allocation2 + $0xa8] sm:$0xf] %v366
    %v371 = vld [vmem:[%s177 + $0x4] sm:$0xff]
    %v372 = vld [vmem:[%s177 + $0xc] sm:$0xf]
    %v373 = vmul.f32 %v371, %v351
    %v374 = vmul.f32 %v372, %v350
    %v377 = vcombine.high %v373, %v373
    %378 = vrot.lane.b32.xlu0 %v373, 127
    %v379 = vpop.permute.xlu0 %378
    %380 = vrot.lane.b32.xlu0 %v377, 127
    %v381 = vpop.permute.xlu0 %380
    %382 = vrot.lane.b32.xlu0 %v374, 127
    %v383 = vpop.permute.xlu0 %382
    %v384 = vsel %vm293, %v379, %v381
    %v385 = vsel %vm293, %v381, %v383
    %388 = vst [vmem:[#allocation2 + $0xb0] sm:$0xf] %v384
    %389 = vst [vmem:[#allocation2 + $0xb8] sm:$0xf] %v385
    %v390 = vld [vmem:[#allocation4 + $0x4] sm:$0xff]
    %v391 = vld [vmem:[#allocation4 + $0xc] sm:$0xf]
    %392 = vrot.lane.b32.xlu0 %v151, 15
    %v393 = vpop.permute.xlu0 %392
    %v394 = vrot.slane %v393, 4
    %v395 = vsel %vm262, %v394, %v393
    %v398 = vmul.f32 %v390, %v395
    %v399 = vmul.f32 %v391, %v394
    %v402 = vcombine.high %v398, %v398
    %403 = vrot.lane.b32.xlu0 %v398, 113
    %v404 = vpop.permute.xlu0 %403
    %405 = vrot.lane.b32.xlu0 %v402, 113
    %v406 = vpop.permute.xlu0 %405
    %407 = vrot.lane.b32.xlu0 %v399, 113
    %v408 = vpop.permute.xlu0 %407
    %v409 = vsel %vm247, %v404, %v406
    %v410 = vsel %vm247, %v406, %v408
    %413 = vst [vmem:[#allocation2 + $0xc0] sm:$0xf] %v409
    %414 = vst [vmem:[#allocation2 + $0xc8] sm:$0xf] %v410
    %v415 = vld [vmem:[%s177 + $0x4] sm:$0xff]
    %v416 = vld [vmem:[%s177 + $0xc] sm:$0xf]
    %v417 = vmul.f32 %v415, %v395
    %v418 = vmul.f32 %v416, %v394
    %v421 = vcombine.high %v417, %v417
    %422 = vrot.lane.b32.xlu0 %v417, 113
    %v423 = vpop.permute.xlu0 %422
    %424 = vrot.lane.b32.xlu0 %v421, 113
    %v425 = vpop.permute.xlu0 %424
    %426 = vrot.lane.b32.xlu0 %v418, 113
    %v427 = vpop.permute.xlu0 %426
    %v428 = vsel %vm247, %v423, %v425
    %v429 = vsel %vm247, %v425, %v427
    %432 = vst [vmem:[#allocation2 + $0xd0] sm:$0xf] %v428
    %433 = vst [vmem:[#allocation2 + $0xd8] sm:$0xf] %v429
    %v434 = vld [vmem:[#allocation4 + $0x4] sm:$0xff]
    %v435 = vld [vmem:[#allocation4 + $0xc] sm:$0xf]
    %v438 = vcombine.high %v434, %v434
    %439 = vrot.lane.b32.xlu0 %v434, 112
    %v440 = vpop.permute.xlu0 %439
    %441 = vrot.lane.b32.xlu0 %v438, 112
    %v442 = vpop.permute.xlu0 %441
    %443 = vrot.lane.b32.xlu0 %v435, 112
    %v444 = vpop.permute.xlu0 %443
    %vm445 = vcmask 916480
    %v446 = vsel %vm445, %v440, %v442
    %v447 = vsel %vm445, %v442, %v444
    %450 = vst [vmem:[#allocation2 + $0xe0] sm:$0xf] %v446
    %451 = vst [vmem:[#allocation2 + $0xe8] sm:$0xf] %v447
    %v452 = vld [vmem:[%s177 + $0x4] sm:$0xff]
    %v453 = vld [vmem:[%s177 + $0xc] sm:$0xf]
    %v456 = vcombine.high %v452, %v452
    %457 = vrot.lane.b32.xlu0 %v452, 112
    %v458 = vpop.permute.xlu0 %457
    %459 = vrot.lane.b32.xlu0 %v456, 112
    %v460 = vpop.permute.xlu0 %459
    %461 = vrot.lane.b32.xlu0 %v453, 112
    %v462 = vpop.permute.xlu0 %461
    %v463 = vsel %vm445, %v458, %v460
    %v464 = vsel %vm445, %v460, %v462
    %467 = vst [vmem:[#allocation2 + $0xf0] sm:$0xf] %v463
    %468 = vst [vmem:[#allocation2 + $0xf8] sm:$0xf] %v464
    %v469 = vld [vmem:[#allocation4 + $0x4] sm:$0xff]
    %v470 = vld [vmem:[#allocation4 + $0xc] sm:$0xf]
    %471 = vrot.lane.b32.xlu0 %v243, 17
    %v472 = vpop.permute.xlu0 %471
    %v473 = vrot.slane %v472, 4
    %v474 = vsel %vm170, %v473, %v472
    %v477 = vmul.f32 %v469, %v474
    %v478 = vmul.f32 %v470, %v473
    %v481 = vcombine.high %v477, %v477
    %482 = vrot.lane.b32.xlu0 %v477, 111
    %v483 = vpop.permute.xlu0 %482
    %484 = vrot.lane.b32.xlu0 %v481, 111
    %v485 = vpop.permute.xlu0 %484
    %486 = vrot.lane.b32.xlu0 %v478, 111
    %v487 = vpop.permute.xlu0 %486
    %v488 = vsel %vm155, %v483, %v485
    %v489 = vsel %vm155, %v485, %v487
    %492 = vst [vmem:[#allocation2 + $0x100] sm:$0xf] %v488
    %493 = vst [vmem:[#allocation2 + $0x108] sm:$0xf] %v489
    %v494 = vld [vmem:[%s177 + $0x4] sm:$0xff]
    %v495 = vld [vmem:[%s177 + $0xc] sm:$0xf]
    %v496 = vmul.f32 %v494, %v474
    %v497 = vmul.f32 %v495, %v473
    %v500 = vcombine.high %v496, %v496
    %501 = vrot.lane.b32.xlu0 %v496, 111
    %v502 = vpop.permute.xlu0 %501
    %503 = vrot.lane.b32.xlu0 %v500, 111
    %v504 = vpop.permute.xlu0 %503
    %505 = vrot.lane.b32.xlu0 %v497, 111
    %v506 = vpop.permute.xlu0 %505
    %v507 = vsel %vm155, %v502, %v504
    %v508 = vsel %vm155, %v504, %v506
    %511 = vst [vmem:[#allocation2 + $0x110] sm:$0xf] %v507
    %512 = vst [vmem:[#allocation2 + $0x118] sm:$0xf] %v508
    %v513 = vld [vmem:[#allocation9] sm:$0xf]
    %v514 = vld [vmem:[#allocation2] sm:$0xff]
    %v515 = vld [vmem:[#allocation2 + $0x8] sm:$0xff]
    %v516 = vld [vmem:[#allocation2 + $0x10] sm:$0xff]
    %v517 = vld [vmem:[#allocation2 + $0x18] sm:$0xff]
    %v518 = vld [vmem:[#allocation2 + $0x20] sm:$0xff]
    %v519 = vld [vmem:[#allocation2 + $0x28] sm:$0xff]
    %v520 = vld [vmem:[#allocation2 + $0x30] sm:$0xff]
    %v521 = vld [vmem:[#allocation2 + $0x38] sm:$0xff]
    %v522 = vld [vmem:[#allocation2 + $0x40] sm:$0xff]
    %v523 = vld [vmem:[#allocation2 + $0x48] sm:$0xff]
    %v524 = vld [vmem:[#allocation2 + $0x50] sm:$0xff]
    %v525 = vld [vmem:[#allocation2 + $0x58] sm:$0xff]
    %v526 = vld [vmem:[#allocation2 + $0x60] sm:$0xff]
    %v527 = vld [vmem:[#allocation2 + $0x68] sm:$0xff]
    %v528 = vld [vmem:[#allocation2 + $0x70] sm:$0xff]
    %v529 = vld [vmem:[#allocation2 + $0x78] sm:$0xff]
    %v530 = vld [vmem:[#allocation2 + $0x80] sm:$0xff]
    %v531 = vld [vmem:[#allocation2 + $0x88] sm:$0xff]
    %v532 = vld [vmem:[#allocation2 + $0x90] sm:$0xff]
    %v533 = vld [vmem:[#allocation2 + $0x98] sm:$0xff]
    %v534 = vld [vmem:[#allocation2 + $0xa0] sm:$0xff]
    %v535 = vld [vmem:[#allocation2 + $0xa8] sm:$0xff]
    %v536 = vld [vmem:[#allocation2 + $0xb0] sm:$0xff]
    %v537 = vld [vmem:[#allocation2 + $0xb8] sm:$0xff]
    %v538 = vld [vmem:[#allocation2 + $0xc0] sm:$0xff]
    %v539 = vld [vmem:[#allocation2 + $0xc8] sm:$0xff]
    %v540 = vld [vmem:[#allocation2 + $0xd0] sm:$0xff]
    %v541 = vld [vmem:[#allocation2 + $0xd8] sm:$0xff]
    %v542 = vld [vmem:[#allocation2 + $0xe0] sm:$0xff]
    %v543 = vld [vmem:[#allocation2 + $0xe8] sm:$0xff]
    %v544 = vld [vmem:[#allocation2 + $0xf0] sm:$0xff]
    %v545 = vld [vmem:[#allocation2 + $0xf8] sm:$0xff]
    %v546 = vld [vmem:[#allocation2 + $0x100] sm:$0xff]
    %v547 = vld [vmem:[#allocation2 + $0x108] sm:$0xff]
    %v548 = vld [vmem:[#allocation2 + $0x110] sm:$0xff]
    %v549 = vld [vmem:[#allocation2 + $0x118] sm:$0xff]
    %v550 = vld [vmem:[#allocation12] sm:$0xf]
    %552 = vset.pattern.permute.xlu0 0
    %553 = vperm.xlu0 %552, %v550
    %v554 = vpop.permute.xlu0 %553
    %vm556 = vcmask 588800
    %v558 = vsel %vm556, %v513, 0
    %560 = vmatprep.subr.mxu0 %v515
    %561 = vmatpush1.msra.mxu0 %v514
    %562 = vmatprep.subr.mxu0 %v519
    %563 = vmatpush1.msra.mxu0 %v518
    %564 = vmatprep.subr.mxu0 %v523
    %565 = vmatpush1.msra.mxu0 %v522
    %566 = vmatprep.subr.mxu0 %v527
    %567 = vmatpush1.msra.mxu0 %v526
    %568 = vmatprep.subr.mxu0 %v531
    %569 = vmatpush1.msra.mxu0 %v530
    %570 = vmatprep.subr.mxu0 %v535
    %571 = vmatpush1.msra.mxu0 %v534
    %572 = vmatprep.subr.mxu0 %v539
    %573 = vmatpush1.msra.mxu0 %v538
    %574 = vmatprep.subr.mxu0 %v543
    %575 = vmatpush1.msra.mxu0 %v542
    %576 = vmatprep.subr.mxu0 %v547
    %577 = vmatpush1.msra.mxu0 %v546
    %578 = vmatprep.subr.mxu0 0.0
    %579 = vmatpush1.msra.mxu0 0.0
    %580 = vmatprep.subr.mxu0 0.0
    %581 = vmatpush1.msra.mxu0 0.0
    %582 = vmatprep.subr.mxu0 0.0
    %583 = vmatpush1.msra.mxu0 0.0
    %584 = vmatprep.subr.mxu0 0.0
    %585 = vmatpush1.msra.mxu0 0.0
    %586 = vmatprep.subr.mxu0 0.0
    %587 = vmatpush1.msra.mxu0 0.0
    %588 = vmatprep.subr.mxu0 0.0
    %589 = vmatpush1.msra.mxu0 0.0
    %590 = vmatprep.subr.mxu0 0.0
    %591 = vmatpush1.msra.mxu0 0.0
    %592 = vmatprep.subr.mxu0 0.0
    %593 = vmatpush1.msra.mxu0 0.0
    %594 = vmatprep.subr.mxu0 0.0
    %595 = vmatpush1.msra.mxu0 0.0
    %596 = vmatprep.subr.mxu0 0.0
    %597 = vmatpush1.msra.mxu0 0.0
    %598 = vmatprep.subr.mxu0 0.0
    %599 = vmatpush1.msra.mxu0 0.0
    %600 = vmatprep.subr.mxu0 0.0
    %601 = vmatpush1.msra.mxu0 0.0
    %602 = vmatprep.subr.mxu0 0.0
    %603 = vmatpush1.msra.mxu0 0.0
    %604 = vmatprep.subr.mxu0 0.0
    %605 = vmatpush1.msra.mxu0 0.0
    %606 = vmatprep.subr.mxu0 0.0
    %607 = vmatpush1.msra.mxu0 0.0
    %608 = vmatprep.subr.mxu0 0.0
    %609 = vmatpush1.msra.mxu0 0.0
    %610 = vmatprep.subr.mxu0 0.0
    %611 = vmatpush1.msra.mxu0 0.0
    %612 = vmatprep.subr.mxu0 0.0
    %613 = vmatpush1.msra.mxu0 0.0
    %614 = vmatprep.subr.mxu0 0.0
    %615 = vmatpush1.msra.mxu0 0.0
    %616 = vmatprep.subr.mxu0 0.0
    %617 = vmatpush1.msra.mxu0 0.0
    %618 = vmatprep.subr.mxu0 0.0
    %619 = vmatpush1.msra.mxu0 0.0
    %620 = vmatprep.subr.mxu0 0.0
    %621 = vmatpush1.msra.mxu0 0.0
    %622 = vmatprep.subr.mxu0 0.0
    %623 = vmatpush1.msra.mxu0 0.0
    %624 = vmatprep.mubr.f32.mxu0 0.0
    %625 = vmatmul.mubr.f32.gmra.mrb[0].mxu0 %v558
    %v626 = vpop.f32.mrb[0].mxu0
    %v627 = vadd.f32 %v554, %v626
    %v628 = vpop.f32.mrb[0].mxu0
    %v629 = vadd.f32 %v554, %v628
    %630 = vdwg.mxu0
    %631 = vmatprep.subr.mxu0 %v517
    %632 = vmatpush1.msra.mxu0 %v516
    %633 = vmatprep.subr.mxu0 %v521
    %634 = vmatpush1.msra.mxu0 %v520
    %635 = vmatprep.subr.mxu0 %v525
    %636 = vmatpush1.msra.mxu0 %v524
    %637 = vmatprep.subr.mxu0 %v529
    %638 = vmatpush1.msra.mxu0 %v528
    %639 = vmatprep.subr.mxu0 %v533
    %640 = vmatpush1.msra.mxu0 %v532
    %641 = vmatprep.subr.mxu0 %v537
    %642 = vmatpush1.msra.mxu0 %v536
    %643 = vmatprep.subr.mxu0 %v541
    %644 = vmatpush1.msra.mxu0 %v540
    %645 = vmatprep.subr.mxu0 %v545
    %646 = vmatpush1.msra.mxu0 %v544
    %647 = vmatprep.subr.mxu0 %v549
    %648 = vmatpush1.msra.mxu0 %v548
    %649 = vmatprep.subr.mxu0 0.0
    %650 = vmatpush1.msra.mxu0 0.0
    %651 = vmatprep.subr.mxu0 0.0
    %652 = vmatpush1.msra.mxu0 0.0
    %653 = vmatprep.subr.mxu0 0.0
    %654 = vmatpush1.msra.mxu0 0.0
    %655 = vmatprep.subr.mxu0 0.0
    %656 = vmatpush1.msra.mxu0 0.0
    %657 = vmatprep.subr.mxu0 0.0
    %658 = vmatpush1.msra.mxu0 0.0
    %659 = vmatprep.subr.mxu0 0.0
    %660 = vmatpush1.msra.mxu0 0.0
    %661 = vmatprep.subr.mxu0 0.0
    %662 = vmatpush1.msra.mxu0 0.0
    %663 = vmatprep.subr.mxu0 0.0
    %664 = vmatpush1.msra.mxu0 0.0
    %665 = vmatprep.subr.mxu0 0.0
    %666 = vmatpush1.msra.mxu0 0.0
    %667 = vmatprep.subr.mxu0 0.0
    %668 = vmatpush1.msra.mxu0 0.0
    %669 = vmatprep.subr.mxu0 0.0
    %670 = vmatpush1.msra.mxu0 0.0
    %671 = vmatprep.subr.mxu0 0.0
    %672 = vmatpush1.msra.mxu0 0.0
    %673 = vmatprep.subr.mxu0 0.0
    %674 = vmatpush1.msra.mxu0 0.0
    %675 = vmatprep.subr.mxu0 0.0
    %676 = vmatpush1.msra.mxu0 0.0
    %677 = vmatprep.subr.mxu0 0.0
    %678 = vmatpush1.msra.mxu0 0.0
    %679 = vmatprep.subr.mxu0 0.0
    %680 = vmatpush1.msra.mxu0 0.0
    %681 = vmatprep.subr.mxu0 0.0
    %682 = vmatpush1.msra.mxu0 0.0
    %683 = vmatprep.subr.mxu0 0.0
    %684 = vmatpush1.msra.mxu0 0.0
    %685 = vmatprep.subr.mxu0 0.0
    %686 = vmatpush1.msra.mxu0 0.0
    %687 = vmatprep.subr.mxu0 0.0
    %688 = vmatpush1.msra.mxu0 0.0
    %689 = vmatprep.subr.mxu0 0.0
    %690 = vmatpush1.msra.mxu0 0.0
    %691 = vmatprep.subr.mxu0 0.0
    %692 = vmatpush1.msra.mxu0 0.0
    %693 = vmatprep.subr.mxu0 0.0
    %694 = vmatpush1.msra.mxu0 0.0
    %695 = vmatprep.mubr.f32.mxu0 0.0
    %696 = vmatmul.mubr.f32.gmra.mrb[0].mxu0 %v558
    %v697 = vpop.f32.mrb[0].mxu0
    %v698 = vadd.f32 %v554, %v697
    %v699 = vpop.f32.mrb[0].mxu0
    %v700 = vadd.f32 %v554, %v699
    %701 = vdwg.mxu0
    %v702 = vmax.f32 %v627, 0.0
    %v703 = vmax.f32 %v629, 0.0
    %v704 = vmax.f32 %v698, 0.0
    %v705 = vmax.f32 %v700, 0.0
    %v708 = vcombine.low %v702, %v703
    %710 = vst [vmem:[#allocation3 + $0x4] sm:$0xff] %v708
    %v713 = vcombine.low %v704, %v705
    %715 = vst [vmem:[%s137 + $0x4] sm:$0xff] %v713
    %v716 = vld [vmem:[#allocation3] sm:$0xff]
    %v717 = vld [vmem:[#allocation3 + $0x8] sm:$0xf]
    %v718 = vmul.f32 %v716, %v156
    %v719 = vmul.f32 %v717, %v154
    %v722 = vcombine.high %v718, %v718
    %723 = vrot.lane.b32.xlu0 %v718, 17
    %v724 = vpop.permute.xlu0 %723
    %725 = vrot.lane.b32.xlu0 %v722, 17
    %v726 = vpop.permute.xlu0 %725
    %727 = vrot.lane.b32.xlu0 %v719, 17
    %v728 = vpop.permute.xlu0 %727
    %v729 = vsel %vm170, %v724, %v726
    %v730 = vsel %vm170, %v726, %v728
    %733 = vst [vmem:[#allocation2] sm:$0xf] %v729
    %734 = vst [vmem:[#allocation2 + $0x8] sm:$0xf] %v730
    %v735 = vld [vmem:[%s137] sm:$0xff]
    %v736 = vld [vmem:[%s137 + $0x8] sm:$0xf]
    %v737 = vmul.f32 %v735, %v156
    %v738 = vmul.f32 %v736, %v154
    %v741 = vcombine.high %v737, %v737
    %742 = vrot.lane.b32.xlu0 %v737, 17
    %v743 = vpop.permute.xlu0 %742
    %744 = vrot.lane.b32.xlu0 %v741, 17
    %v745 = vpop.permute.xlu0 %744
    %746 = vrot.lane.b32.xlu0 %v738, 17
    %v747 = vpop.permute.xlu0 %746
    %v748 = vsel %vm170, %v743, %v745
    %v749 = vsel %vm170, %v745, %v747
    %752 = vst [vmem:[#allocation2 + $0x10] sm:$0xf] %v748
    %753 = vst [vmem:[#allocation2 + $0x18] sm:$0xf] %v749
    %v754 = vld [vmem:[#allocation3] sm:$0xff]
    %v755 = vld [vmem:[#allocation3 + $0x8] sm:$0xf]
    %v758 = vcombine.high %v754, %v754
    %759 = vrot.lane.b32.xlu0 %v754, 16
    %v760 = vpop.permute.xlu0 %759
    %761 = vrot.lane.b32.xlu0 %v758, 16
    %v762 = vpop.permute.xlu0 %761
    %763 = vrot.lane.b32.xlu0 %v755, 16
    %v764 = vpop.permute.xlu0 %763
    %v765 = vsel %vm208, %v760, %v762
    %v766 = vsel %vm208, %v762, %v764
    %769 = vst [vmem:[#allocation2 + $0x20] sm:$0xf] %v765
    %770 = vst [vmem:[#allocation2 + $0x28] sm:$0xf] %v766
    %v771 = vld [vmem:[%s137] sm:$0xff]
    %v772 = vld [vmem:[%s137 + $0x8] sm:$0xf]
    %v775 = vcombine.high %v771, %v771
    %776 = vrot.lane.b32.xlu0 %v771, 16
    %v777 = vpop.permute.xlu0 %776
    %778 = vrot.lane.b32.xlu0 %v775, 16
    %v779 = vpop.permute.xlu0 %778
    %780 = vrot.lane.b32.xlu0 %v772, 16
    %v781 = vpop.permute.xlu0 %780
    %v782 = vsel %vm208, %v777, %v779
    %v783 = vsel %vm208, %v779, %v781
    %786 = vst [vmem:[#allocation2 + $0x30] sm:$0xf] %v782
    %787 = vst [vmem:[#allocation2 + $0x38] sm:$0xf] %v783
    %v788 = vld [vmem:[#allocation3] sm:$0xff]
    %v789 = vld [vmem:[#allocation3 + $0x8] sm:$0xf]
    %v790 = vmul.f32 %v788, %v248
    %v791 = vmul.f32 %v789, %v246
    %v794 = vcombine.high %v790, %v790
    %795 = vrot.lane.b32.xlu0 %v790, 15
    %v796 = vpop.permute.xlu0 %795
    %797 = vrot.lane.b32.xlu0 %v794, 15
    %v798 = vpop.permute.xlu0 %797
    %799 = vrot.lane.b32.xlu0 %v791, 15
    %v800 = vpop.permute.xlu0 %799
    %v801 = vsel %vm262, %v796, %v798
    %v802 = vsel %vm262, %v798, %v800
    %805 = vst [vmem:[#allocation2 + $0x40] sm:$0xf] %v801
    %806 = vst [vmem:[#allocation2 + $0x48] sm:$0xf] %v802
    %v807 = vld [vmem:[%s137] sm:$0xff]
    %v808 = vld [vmem:[%s137 + $0x8] sm:$0xf]
    %v809 = vmul.f32 %v807, %v248
    %v810 = vmul.f32 %v808, %v246
    %v813 = vcombine.high %v809, %v809
    %814 = vrot.lane.b32.xlu0 %v809, 15
    %v815 = vpop.permute.xlu0 %814
    %816 = vrot.lane.b32.xlu0 %v813, 15
    %v817 = vpop.permute.xlu0 %816
    %818 = vrot.lane.b32.xlu0 %v810, 15
    %v819 = vpop.permute.xlu0 %818
    %v820 = vsel %vm262, %v815, %v817
    %v821 = vsel %vm262, %v817, %v819
    %824 = vst [vmem:[#allocation2 + $0x50] sm:$0xf] %v820
    %825 = vst [vmem:[#allocation2 + $0x58] sm:$0xf] %v821
    %v826 = vld [vmem:[#allocation3] sm:$0xff]
    %v827 = vld [vmem:[#allocation3 + $0x8] sm:$0xf]
    %v828 = vmul.f32 %v826, %v294
    %v829 = vmul.f32 %v827, %v292
    %v832 = vcombine.high %v828, %v828
    %833 = vrot.lane.b32.xlu0 %v828, 1
    %v834 = vpop.permute.xlu0 %833
    %835 = vrot.lane.b32.xlu0 %v832, 1
    %v836 = vpop.permute.xlu0 %835
    %837 = vrot.lane.b32.xlu0 %v829, 1
    %v838 = vpop.permute.xlu0 %837
    %v839 = vsel %vm308, %v834, %v836
    %v840 = vsel %vm308, %v836, %v838
    %843 = vst [vmem:[#allocation2 + $0x60] sm:$0xf] %v839
    %844 = vst [vmem:[#allocation2 + $0x68] sm:$0xf] %v840
    %v845 = vld [vmem:[%s137] sm:$0xff]
    %v846 = vld [vmem:[%s137 + $0x8] sm:$0xf]
    %v847 = vmul.f32 %v845, %v294
    %v848 = vmul.f32 %v846, %v292
    %v851 = vcombine.high %v847, %v847
    %852 = vrot.lane.b32.xlu0 %v847, 1
    %v853 = vpop.permute.xlu0 %852
    %854 = vrot.lane.b32.xlu0 %v851, 1
    %v855 = vpop.permute.xlu0 %854
    %856 = vrot.lane.b32.xlu0 %v848, 1
    %v857 = vpop.permute.xlu0 %856
    %v858 = vsel %vm308, %v853, %v855
    %v859 = vsel %vm308, %v855, %v857
    %862 = vst [vmem:[#allocation2 + $0x70] sm:$0xf] %v858
    %863 = vst [vmem:[#allocation2 + $0x78] sm:$0xf] %v859
    %v864 = vld [vmem:[#allocation3 + $0x4] sm:$0xff]
    %v866 = vcombine.high %v864, %v864
    %868 = vst [vmem:[#allocation2 + $0x80] sm:$0xf] %v864
    %869 = vst [vmem:[#allocation2 + $0x88] sm:$0xf] %v866
    %v870 = vld [vmem:[%s137 + $0x4] sm:$0xff]
    %v872 = vcombine.high %v870, %v870
    %874 = vst [vmem:[#allocation2 + $0x90] sm:$0xf] %v870
    %875 = vst [vmem:[#allocation2 + $0x98] sm:$0xf] %v872
    %v876 = vld [vmem:[#allocation3 + $0x4] sm:$0xff]
    %v877 = vld [vmem:[#allocation3 + $0xc] sm:$0xf]
    %v878 = vmul.f32 %v876, %v351
    %v879 = vmul.f32 %v877, %v350
    %v882 = vcombine.high %v878, %v878
    %883 = vrot.lane.b32.xlu0 %v878, 127
    %v884 = vpop.permute.xlu0 %883
    %885 = vrot.lane.b32.xlu0 %v882, 127
    %v886 = vpop.permute.xlu0 %885
    %887 = vrot.lane.b32.xlu0 %v879, 127
    %v888 = vpop.permute.xlu0 %887
    %v889 = vsel %vm293, %v884, %v886
    %v890 = vsel %vm293, %v886, %v888
    %893 = vst [vmem:[#allocation2 + $0xa0] sm:$0xf] %v889
    %894 = vst [vmem:[#allocation2 + $0xa8] sm:$0xf] %v890
    %v895 = vld [vmem:[%s137 + $0x4] sm:$0xff]
    %v896 = vld [vmem:[%s137 + $0xc] sm:$0xf]
    %v897 = vmul.f32 %v895, %v351
    %v898 = vmul.f32 %v896, %v350
    %v901 = vcombine.high %v897, %v897
    %902 = vrot.lane.b32.xlu0 %v897, 127
    %v903 = vpop.permute.xlu0 %902
    %904 = vrot.lane.b32.xlu0 %v901, 127
    %v905 = vpop.permute.xlu0 %904
    %906 = vrot.lane.b32.xlu0 %v898, 127
    %v907 = vpop.permute.xlu0 %906
    %v908 = vsel %vm293, %v903, %v905
    %v909 = vsel %vm293, %v905, %v907
    %912 = vst [vmem:[#allocation2 + $0xb0] sm:$0xf] %v908
    %913 = vst [vmem:[#allocation2 + $0xb8] sm:$0xf] %v909
    %v914 = vld [vmem:[#allocation3 + $0x4] sm:$0xff]
    %v915 = vld [vmem:[#allocation3 + $0xc] sm:$0xf]
    %v916 = vmul.f32 %v914, %v395
    %v917 = vmul.f32 %v915, %v394
    %v920 = vcombine.high %v916, %v916
    %921 = vrot.lane.b32.xlu0 %v916, 113
    %v922 = vpop.permute.xlu0 %921
    %923 = vrot.lane.b32.xlu0 %v920, 113
    %v924 = vpop.permute.xlu0 %923
    %925 = vrot.lane.b32.xlu0 %v917, 113
    %v926 = vpop.permute.xlu0 %925
    %v927 = vsel %vm247, %v922, %v924
    %v928 = vsel %vm247, %v924, %v926
    %931 = vst [vmem:[#allocation2 + $0xc0] sm:$0xf] %v927
    %932 = vst [vmem:[#allocation2 + $0xc8] sm:$0xf] %v928
    %v933 = vld [vmem:[%s137 + $0x4] sm:$0xff]
    %v934 = vld [vmem:[%s137 + $0xc] sm:$0xf]
    %v935 = vmul.f32 %v933, %v395
    %v936 = vmul.f32 %v934, %v394
    %v939 = vcombine.high %v935, %v935
    %940 = vrot.lane.b32.xlu0 %v935, 113
    %v941 = vpop.permute.xlu0 %940
    %942 = vrot.lane.b32.xlu0 %v939, 113
    %v943 = vpop.permute.xlu0 %942
    %944 = vrot.lane.b32.xlu0 %v936, 113
    %v945 = vpop.permute.xlu0 %944
    %v946 = vsel %vm247, %v941, %v943
    %v947 = vsel %vm247, %v943, %v945
    %950 = vst [vmem:[#allocation2 + $0xd0] sm:$0xf] %v946
    %951 = vst [vmem:[#allocation2 + $0xd8] sm:$0xf] %v947
    %v952 = vld [vmem:[#allocation3 + $0x4] sm:$0xff]
    %v953 = vld [vmem:[#allocation3 + $0xc] sm:$0xf]
    %v956 = vcombine.high %v952, %v952
    %957 = vrot.lane.b32.xlu0 %v952, 112
    %v958 = vpop.permute.xlu0 %957
    %959 = vrot.lane.b32.xlu0 %v956, 112
    %v960 = vpop.permute.xlu0 %959
    %961 = vrot.lane.b32.xlu0 %v953, 112
    %v962 = vpop.permute.xlu0 %961
    %v963 = vsel %vm445, %v958, %v960
    %v964 = vsel %vm445, %v960, %v962
    %967 = vst [vmem:[#allocation2 + $0xe0] sm:$0xf] %v963
    %968 = vst [vmem:[#allocation2 + $0xe8] sm:$0xf] %v964
    %v969 = vld [vmem:[%s137 + $0x4] sm:$0xff]
    %v970 = vld [vmem:[%s137 + $0xc] sm:$0xf]
    %v973 = vcombine.high %v969, %v969
    %974 = vrot.lane.b32.xlu0 %v969, 112
    %v975 = vpop.permute.xlu0 %974
    %976 = vrot.lane.b32.xlu0 %v973, 112
    %v977 = vpop.permute.xlu0 %976
    %978 = vrot.lane.b32.xlu0 %v970, 112
    %v979 = vpop.permute.xlu0 %978
    %v980 = vsel %vm445, %v975, %v977
    %v981 = vsel %vm445, %v977, %v979
    %984 = vst [vmem:[#allocation2 + $0xf0] sm:$0xf] %v980
    %985 = vst [vmem:[#allocation2 + $0xf8] sm:$0xf] %v981
    %v986 = vld [vmem:[#allocation3 + $0x4] sm:$0xff]
    %v987 = vld [vmem:[#allocation3 + $0xc] sm:$0xf]
    %v988 = vmul.f32 %v986, %v474
    %v989 = vmul.f32 %v987, %v473
    %v992 = vcombine.high %v988, %v988
    %993 = vrot.lane.b32.xlu0 %v988, 111
    %v994 = vpop.permute.xlu0 %993
    %995 = vrot.lane.b32.xlu0 %v992, 111
    %v996 = vpop.permute.xlu0 %995
    %997 = vrot.lane.b32.xlu0 %v989, 111
    %v998 = vpop.permute.xlu0 %997
    %v999 = vsel %vm155, %v994, %v996
    %v1000 = vsel %vm155, %v996, %v998
    %1003 = vst [vmem:[#allocation2 + $0x100] sm:$0xf] %v999
    %1004 = vst [vmem:[#allocation2 + $0x108] sm:$0xf] %v1000
    %v1005 = vld [vmem:[%s137 + $0x4] sm:$0xff]
    %v1006 = vld [vmem:[%s137 + $0xc] sm:$0xf]
    %v1007 = vmul.f32 %v1005, %v474
    %v1008 = vmul.f32 %v1006, %v473
    %v1011 = vcombine.high %v1007, %v1007
    %1012 = vrot.lane.b32.xlu0 %v1007, 111
    %v1013 = vpop.permute.xlu0 %1012
    %1014 = vrot.lane.b32.xlu0 %v1011, 111
    %v1015 = vpop.permute.xlu0 %1014
    %1016 = vrot.lane.b32.xlu0 %v1008, 111
    %v1017 = vpop.permute.xlu0 %1016
    %v1018 = vsel %vm155, %v1013, %v1015
    %v1019 = vsel %vm155, %v1015, %v1017
    %1022 = vst [vmem:[#allocation2 + $0x110] sm:$0xf] %v1018
    %1023 = vst [vmem:[#allocation2 + $0x118] sm:$0xf] %v1019
    %v1024 = vld [vmem:[#allocation10] sm:$0xf]
    %v1025 = vld [vmem:[#allocation2] sm:$0xff]
    %v1026 = vld [vmem:[#allocation2 + $0x8] sm:$0xff]
    %v1027 = vld [vmem:[#allocation2 + $0x10] sm:$0xff]
    %v1028 = vld [vmem:[#allocation2 + $0x18] sm:$0xff]
    %v1029 = vld [vmem:[#allocation2 + $0x20] sm:$0xff]
    %v1030 = vld [vmem:[#allocation2 + $0x28] sm:$0xff]
    %v1031 = vld [vmem:[#allocation2 + $0x30] sm:$0xff]
    %v1032 = vld [vmem:[#allocation2 + $0x38] sm:$0xff]
    %v1033 = vld [vmem:[#allocation2 + $0x40] sm:$0xff]
    %v1034 = vld [vmem:[#allocation2 + $0x48] sm:$0xff]
    %v1035 = vld [vmem:[#allocation2 + $0x50] sm:$0xff]
    %v1036 = vld [vmem:[#allocation2 + $0x58] sm:$0xff]
    %v1037 = vld [vmem:[#allocation2 + $0x60] sm:$0xff]
    %v1038 = vld [vmem:[#allocation2 + $0x68] sm:$0xff]
    %v1039 = vld [vmem:[#allocation2 + $0x70] sm:$0xff]
    %v1040 = vld [vmem:[#allocation2 + $0x78] sm:$0xff]
    %v1041 = vld [vmem:[#allocation2 + $0x80] sm:$0xff]
    %v1042 = vld [vmem:[#allocation2 + $0x88] sm:$0xff]
    %v1043 = vld [vmem:[#allocation2 + $0x90] sm:$0xff]
    %v1044 = vld [vmem:[#allocation2 + $0x98] sm:$0xff]
    %v1045 = vld [vmem:[#allocation2 + $0xa0] sm:$0xff]
    %v1046 = vld [vmem:[#allocation2 + $0xa8] sm:$0xff]
    %v1047 = vld [vmem:[#allocation2 + $0xb0] sm:$0xff]
    %v1048 = vld [vmem:[#allocation2 + $0xb8] sm:$0xff]
    %v1049 = vld [vmem:[#allocation2 + $0xc0] sm:$0xff]
    %v1050 = vld [vmem:[#allocation2 + $0xc8] sm:$0xff]
    %v1051 = vld [vmem:[#allocation2 + $0xd0] sm:$0xff]
    %v1052 = vld [vmem:[#allocation2 + $0xd8] sm:$0xff]
    %v1053 = vld [vmem:[#allocation2 + $0xe0] sm:$0xff]
    %v1054 = vld [vmem:[#allocation2 + $0xe8] sm:$0xff]
    %v1055 = vld [vmem:[#allocation2 + $0xf0] sm:$0xff]
    %v1056 = vld [vmem:[#allocation2 + $0xf8] sm:$0xff]
    %v1057 = vld [vmem:[#allocation2 + $0x100] sm:$0xff]
    %v1058 = vld [vmem:[#allocation2 + $0x108] sm:$0xff]
    %v1059 = vld [vmem:[#allocation2 + $0x110] sm:$0xff]
    %v1060 = vld [vmem:[#allocation2 + $0x118] sm:$0xff]
    %v1061 = vld [vmem:[#allocation13] sm:$0xf]
    %1063 = vset.pattern.permute.xlu0 0
    %1064 = vperm.xlu0 %1063, %v1061
    %v1065 = vpop.permute.xlu0 %1064
    %v1068 = vsel %vm556, %v1024, 0
    %1070 = vmatprep.subr.mxu0 %v1026
    %1071 = vmatpush1.msra.mxu0 %v1025
    %1072 = vmatprep.subr.mxu0 %v1030
    %1073 = vmatpush1.msra.mxu0 %v1029
    %1074 = vmatprep.subr.mxu0 %v1034
    %1075 = vmatpush1.msra.mxu0 %v1033
    %1076 = vmatprep.subr.mxu0 %v1038
    %1077 = vmatpush1.msra.mxu0 %v1037
    %1078 = vmatprep.subr.mxu0 %v1042
    %1079 = vmatpush1.msra.mxu0 %v1041
    %1080 = vmatprep.subr.mxu0 %v1046
    %1081 = vmatpush1.msra.mxu0 %v1045
    %1082 = vmatprep.subr.mxu0 %v1050
    %1083 = vmatpush1.msra.mxu0 %v1049
    %1084 = vmatprep.subr.mxu0 %v1054
    %1085 = vmatpush1.msra.mxu0 %v1053
    %1086 = vmatprep.subr.mxu0 %v1058
    %1087 = vmatpush1.msra.mxu0 %v1057
    %1088 = vmatprep.subr.mxu0 0.0
    %1089 = vmatpush1.msra.mxu0 0.0
    %1090 = vmatprep.subr.mxu0 0.0
    %1091 = vmatpush1.msra.mxu0 0.0
    %1092 = vmatprep.subr.mxu0 0.0
    %1093 = vmatpush1.msra.mxu0 0.0
    %1094 = vmatprep.subr.mxu0 0.0
    %1095 = vmatpush1.msra.mxu0 0.0
    %1096 = vmatprep.subr.mxu0 0.0
    %1097 = vmatpush1.msra.mxu0 0.0
    %1098 = vmatprep.subr.mxu0 0.0
    %1099 = vmatpush1.msra.mxu0 0.0
    %1100 = vmatprep.subr.mxu0 0.0
    %1101 = vmatpush1.msra.mxu0 0.0
    %1102 = vmatprep.subr.mxu0 0.0
    %1103 = vmatpush1.msra.mxu0 0.0
    %1104 = vmatprep.subr.mxu0 0.0
    %1105 = vmatpush1.msra.mxu0 0.0
    %1106 = vmatprep.subr.mxu0 0.0
    %1107 = vmatpush1.msra.mxu0 0.0
    %1108 = vmatprep.subr.mxu0 0.0
    %1109 = vmatpush1.msra.mxu0 0.0
    %1110 = vmatprep.subr.mxu0 0.0
    %1111 = vmatpush1.msra.mxu0 0.0
    %1112 = vmatprep.subr.mxu0 0.0
    %1113 = vmatpush1.msra.mxu0 0.0
    %1114 = vmatprep.subr.mxu0 0.0
    %1115 = vmatpush1.msra.mxu0 0.0
    %1116 = vmatprep.subr.mxu0 0.0
    %1117 = vmatpush1.msra.mxu0 0.0
    %1118 = vmatprep.subr.mxu0 0.0
    %1119 = vmatpush1.msra.mxu0 0.0
    %1120 = vmatprep.subr.mxu0 0.0
    %1121 = vmatpush1.msra.mxu0 0.0
    %1122 = vmatprep.subr.mxu0 0.0
    %1123 = vmatpush1.msra.mxu0 0.0
    %1124 = vmatprep.subr.mxu0 0.0
    %1125 = vmatpush1.msra.mxu0 0.0
    %1126 = vmatprep.subr.mxu0 0.0
    %1127 = vmatpush1.msra.mxu0 0.0
    %1128 = vmatprep.subr.mxu0 0.0
    %1129 = vmatpush1.msra.mxu0 0.0
    %1130 = vmatprep.subr.mxu0 0.0
    %1131 = vmatpush1.msra.mxu0 0.0
    %1132 = vmatprep.subr.mxu0 0.0
    %1133 = vmatpush1.msra.mxu0 0.0
    %1134 = vmatprep.mubr.f32.mxu0 0.0
    %1135 = vmatmul.mubr.f32.gmra.mrb[0].mxu0 %v1068
    %v1136 = vpop.f32.mrb[0].mxu0
    %v1137 = vadd.f32 %v1065, %v1136
    %v1138 = vpop.f32.mrb[0].mxu0
    %v1139 = vadd.f32 %v1065, %v1138
    %1140 = vdwg.mxu0
    %1141 = vmatprep.subr.mxu0 %v1028
    %1142 = vmatpush1.msra.mxu0 %v1027
    %1143 = vmatprep.subr.mxu0 %v1032
    %1144 = vmatpush1.msra.mxu0 %v1031
    %1145 = vmatprep.subr.mxu0 %v1036
    %1146 = vmatpush1.msra.mxu0 %v1035
    %1147 = vmatprep.subr.mxu0 %v1040
    %1148 = vmatpush1.msra.mxu0 %v1039
    %1149 = vmatprep.subr.mxu0 %v1044
    %1150 = vmatpush1.msra.mxu0 %v1043
    %1151 = vmatprep.subr.mxu0 %v1048
    %1152 = vmatpush1.msra.mxu0 %v1047
    %1153 = vmatprep.subr.mxu0 %v1052
    %1154 = vmatpush1.msra.mxu0 %v1051
    %1155 = vmatprep.subr.mxu0 %v1056
    %1156 = vmatpush1.msra.mxu0 %v1055
    %1157 = vmatprep.subr.mxu0 %v1060
    %1158 = vmatpush1.msra.mxu0 %v1059
    %1159 = vmatprep.subr.mxu0 0.0
    %1160 = vmatpush1.msra.mxu0 0.0
    %1161 = vmatprep.subr.mxu0 0.0
    %1162 = vmatpush1.msra.mxu0 0.0
    %1163 = vmatprep.subr.mxu0 0.0
    %1164 = vmatpush1.msra.mxu0 0.0
    %1165 = vmatprep.subr.mxu0 0.0
    %1166 = vmatpush1.msra.mxu0 0.0
    %1167 = vmatprep.subr.mxu0 0.0
    %1168 = vmatpush1.msra.mxu0 0.0
    %1169 = vmatprep.subr.mxu0 0.0
    %1170 = vmatpush1.msra.mxu0 0.0
    %1171 = vmatprep.subr.mxu0 0.0
    %1172 = vmatpush1.msra.mxu0 0.0
    %1173 = vmatprep.subr.mxu0 0.0
    %1174 = vmatpush1.msra.mxu0 0.0
    %1175 = vmatprep.subr.mxu0 0.0
    %1176 = vmatpush1.msra.mxu0 0.0
    %1177 = vmatprep.subr.mxu0 0.0
    %1178 = vmatpush1.msra.mxu0 0.0
    %1179 = vmatprep.subr.mxu0 0.0
    %1180 = vmatpush1.msra.mxu0 0.0
    %1181 = vmatprep.subr.mxu0 0.0
    %1182 = vmatpush1.msra.mxu0 0.0
    %1183 = vmatprep.subr.mxu0 0.0
    %1184 = vmatpush1.msra.mxu0 0.0
    %1185 = vmatprep.subr.mxu0 0.0
    %1186 = vmatpush1.msra.mxu0 0.0
    %1187 = vmatprep.subr.mxu0 0.0
    %1188 = vmatpush1.msra.mxu0 0.0
    %1189 = vmatprep.subr.mxu0 0.0
    %1190 = vmatpush1.msra.mxu0 0.0
    %1191 = vmatprep.subr.mxu0 0.0
    %1192 = vmatpush1.msra.mxu0 0.0
    %1193 = vmatprep.subr.mxu0 0.0
    %1194 = vmatpush1.msra.mxu0 0.0
    %1195 = vmatprep.subr.mxu0 0.0
    %1196 = vmatpush1.msra.mxu0 0.0
    %1197 = vmatprep.subr.mxu0 0.0
    %1198 = vmatpush1.msra.mxu0 0.0
    %1199 = vmatprep.subr.mxu0 0.0
    %1200 = vmatpush1.msra.mxu0 0.0
    %1201 = vmatprep.subr.mxu0 0.0
    %1202 = vmatpush1.msra.mxu0 0.0
    %1203 = vmatprep.subr.mxu0 0.0
    %1204 = vmatpush1.msra.mxu0 0.0
    %1205 = vmatprep.mubr.f32.mxu0 0.0
    %1206 = vmatmul.mubr.f32.gmra.mrb[0].mxu0 %v1068
    %v1207 = vpop.f32.mrb[0].mxu0
    %v1208 = vadd.f32 %v1065, %v1207
    %v1209 = vpop.f32.mrb[0].mxu0
    %v1210 = vadd.f32 %v1065, %v1209
    %1211 = vdwg.mxu0
    %v1212 = vld [vmem:[#allocation4 + $0x4] sm:$0xff]
    %v1214 = vcombine.high %v1212, %v1212
    %v1216 = vadd.f32 %v1137, %v1212
    %v1217 = vadd.f32 %v1139, %v1214
    %v1218 = vmax.f32 %v1216, 0.0
    %v1219 = vmax.f32 %v1217, 0.0
    %v1222 = vcombine.low %v1218, %v1219
    %1224 = vst [vmem:[#allocation15] sm:$0xff] %v1222
    %v1225 = vld [vmem:[%s177 + $0x4] sm:$0xff]
    %v1227 = vcombine.high %v1225, %v1225
    %v1229 = vadd.f32 %v1208, %v1225
    %v1230 = vadd.f32 %v1210, %v1227
    %v1231 = vmax.f32 %v1229, 0.0
    %v1232 = vmax.f32 %v1230, 0.0
    %v1235 = vcombine.low %v1231, %v1232
    %s1237 = scalar_lea.vmem [#allocation15], 8
    %1238 = vst [vmem:[%s1237] sm:$0xff] %v1235
    // Predicated region
    $region50: #{resnet_block_forward.1} parent=1 // pred_check
      _
    $region51: #{resnet_block_forward.1} parent=1 // pred_check_branch
      %1240 = sbr.rel (0) target = $region53
    $region52: #{resnet_block_forward.1} parent=1 // pred_region
      %s1242 = ssub.s32 256, 256
      %1243 = vsyncadd [#allocation6], %s1242
      %s1244 = sshll.u32 [#allocation15], 4
      %s1245 = int_to_ptr.vmem [resolvable:$true] %s1244
      %1250 = dma.vmem_to_hbm [thread:$0]  %s1245, 256, %s6, [#allocation6], 128, 128, 8
    $region53: #{resnet_block_forward.1} parent=1 // pred_fallthru
      _
    // Predicated region
    $region54: #{resnet_block_forward.1} parent=1 // pred_check
      _
    $region55: #{resnet_block_forward.1} parent=1 // pred_check_branch
      %1252 = sbr.rel (0) target = $region57
    $region56: #{resnet_block_forward.1} parent=1 // pred_region
      %1253 = dma.done [#allocation6], 256
    $region57: #{resnet_block_forward.1} parent=1 // pred_fallthru
      _
    %1254 = vsyncpa [#allocation5], 1
    %1255 = vsyncpa [#allocation8], 1
    %1256 = vsyncpa [#allocation11], 1
    %1257 = vsyncpa [#allocation14], 1
    %1258 = vsyncpa [#allocation6], 1

</llo_original>
